<compile_context>
chip_gen: v7x
topology: tpu7x:2x2x1
jax: 0.10.0
libtpu: 0.0.40
codegen_flags: <defaults>
</compile_context>

<pallas_src>
import jax
import jax.numpy as jnp
from jax import lax
from jax.experimental import pallas as pl
from jax.experimental.pallas import tpu as pltpu


_LANE = 128      # vreg lane width
_SUBLANE = 8     # f32 sublane count


def _round_up(x, m):
    return ((x + m - 1) // m) * m


def _pad_gate_cols(m, H, Hp):
    """(.., 3H) -> (.., 3Hp): gate g occupies lane-aligned columns [g*Hp, g*Hp + H)."""
    if Hp == H:
        return m
    pad = [(0, 0)] * (m.ndim - 1) + [(0, Hp - H)]
    return jnp.concatenate(
        [jnp.pad(m[..., g * H:(g + 1) * H], pad) for g in range(3)], axis=-1)


# --------------------------------------------------------------------------------------
# Fused GRU kernel.  Grid = (batch blocks [parallel], time chunks [arbitrary]).
# Per grid step:
#   1. hoisted input projection for the whole chunk (one big-row MXU matmul -> VMEM gi),
#   2. serial recurrence over the chunk, hidden state carried in VMEM across chunks,
#      one lane-dense (Bb, Hp) output row stored per time step.
# --------------------------------------------------------------------------------------
def _gru_fused_kernel(emb_ref, wih_ref, whh_ref, bfold_ref, bhn_ref,
                      out_ref, gi_scr, h_scr):
    Tc, Bb, E = emb_ref.shape
    Hp = whh_ref.shape[0]

    @pl.when(pl.program_id(1) == 0)            # first time chunk of this batch block
    def _():
        h_scr[...] = jnp.zeros_like(h_scr)

    # Hoisted input projection: gi never touches HBM.  Bb is a multiple of the sublane
    # packing for the matmul dtype, so this leading-dim collapse is tile-preserving.
    x = emb_ref[...].reshape(Tc * Bb, E)
    gi_scr[...] = (
        jnp.dot(x, wih_ref[...], preferred_element_type=jnp.float32) + bfold_ref[...]
    )

    whh = whh_ref[...]                                   # (Hp, 3Hp), resident all chunk
    bhn_b = jnp.broadcast_to(bhn_ref[...], (Bb, Hp))     # hoisted out of the time loop

    def step(t, h):
        row0 = pl.multiple_of(t * Bb, Bb)
        gi_t = gi_scr[pl.ds(row0, Bb), :]                # (Bb, 3Hp), gates lane-aligned
        gh = jnp.dot(h.astype(whh.dtype), whh,
                     preferred_element_type=jnp.float32)             # (Bb, 3Hp)
        r = jax.nn.sigmoid(gi_t[:, :Hp] + gh[:, :Hp])
        z = jax.nn.sigmoid(gi_t[:, Hp:2 * Hp] + gh[:, Hp:2 * Hp])
        n = jnp.tanh(gi_t[:, 2 * Hp:] + r * (gh[:, 2 * Hp:] + bhn_b))
        h_new = n + z * (h - n)
        out_ref[t] = h_new.astype(out_ref.dtype)         # full-lane (Bb, Hp) store
        return h_new

    # Serial dependence chain: deep unrolling buys nothing, cap at 8.
    h_scr[...] = lax.fori_loop(0, Tc, step, h_scr[...], unroll=min(Tc, 8))


# --------------------------------------------------------------------------------------
# Block / chunk sizing helpers (VMEM-aware).
# --------------------------------------------------------------------------------------
def _vmem_bytes_estimate(Tc, Bb, E, Hp, mm_bytes):
    emb_blocks = 2 * Tc * Bb * E * mm_bytes          # double-buffered input chunks
    out_blocks = 2 * Tc * Bb * Hp * 4                # double-buffered output chunks
    weights = 2 * (E + Hp) * 3 * Hp * mm_bytes + 2 * 4 * (3 * Hp + Hp)
    scratch = Tc * Bb * 3 * Hp * 4 + Bb * Hp * 4     # gi chunk + carried hidden state
    return emb_blocks + out_blocks + weights + scratch


def _choose_batch_block(B, row_mult):
    # Large blocks (MXU row fill for h @ W_hh) but >=2 blocks when the batch permits so
    # the "parallel" batch axis actually shards across v7x's two TensorCores.
    if B < 2 * row_mult:
        Bb = _round_up(max(B, 1), row_mult)
    else:
        n_blocks = max(2, pl.cdiv(B, 256))
        Bb = _round_up(pl.cdiv(B, n_blocks), row_mult)
    return Bb, _round_up(B, Bb)


def _choose_time_chunk(T, Bb, E, Hp, mm_bytes, budget_bytes=24 * 1024 * 1024):
    if T <= _SUBLANE:
        return T
    cap = _round_up(T, _SUBLANE)
    for cand in (512, 256, 128, 64, 32, 16, 8):
        if cand <= cap and _vmem_bytes_estimate(cand, Bb, E, Hp, mm_bytes) <= budget_bytes:
            return cand
    return _SUBLANE


def _gru_fused_pallas(emb_tb, w_ih_p, w_hh_p, b_fold_p, b_hn_p, *, Bb, Tc):
    Tp, Bp, E = emb_tb.shape
    Hp = w_hh_p.shape[0]
    G = 3 * Hp
    grid = (Bp // Bb, Tp // Tc)

    est = _vmem_bytes_estimate(Tc, Bb, E, Hp, emb_tb.dtype.itemsize)
    vmem_limit = int(min(100 * 1024 * 1024, max(32 * 1024 * 1024, 2 * est)))

    return pl.pallas_call(
        _gru_fused_kernel,
        out_shape=jax.ShapeDtypeStruct((Tp, Bp, Hp), jnp.float32),
        grid_spec=pltpu.PrefetchScalarGridSpec(
            num_scalar_prefetch=0,
            grid=grid,
            in_specs=[
                pl.BlockSpec((Tc, Bb, E), lambda b, t: (t, b, 0)),   # embedding chunk
                pl.BlockSpec((E, G), lambda b, t: (0, 0)),           # W_ih (gate-padded)
                pl.BlockSpec((Hp, G), lambda b, t: (0, 0)),          # W_hh (gate-padded)
                pl.BlockSpec((1, G), lambda b, t: (0, 0)),           # b_ih + b_hr/b_hz
                pl.BlockSpec((1, Hp), lambda b, t: (0, 0)),          # b_hn
            ],
            out_specs=pl.BlockSpec((Tc, Bb, Hp), lambda b, t: (t, b, 0)),
            scratch_shapes=[
                pltpu.VMEM((Tc * Bb, G), jnp.float32),   # gi chunk (hoisted projection)
                pltpu.VMEM((Bb, Hp), jnp.float32),       # hidden state across time chunks
            ],
        ),
        compiler_params=pltpu.CompilerParams(
            dimension_semantics=("parallel", "arbitrary"),
            vmem_limit_bytes=vmem_limit,
        ),
    )(emb_tb, w_ih_p, w_hh_p, b_fold_p, b_hn_p)


# --------------------------------------------------------------------------------------
# TextEncoderBottom forward (depth=1, dropout_p=0.0 -> identity)
# --------------------------------------------------------------------------------------
def text_encoder_bottom_forward(text, params, *, matmul_dtype=jnp.float32,
                                batch_block=None, time_chunk=None):
    """text: (B, T) int32 token ids.  Returns (B, T, size) f32 (batch_first GRU output)."""
    embed = params["embed"]
    w_ih, w_hh = params["w_ih"], params["w_hh"]
    b_ih, b_hh = params["b_ih"], params["b_hh"]
    H = w_hh.shape[0]
    E = embed.shape[1]
    B, T = text.shape
    Hp = _round_up(H, _LANE)                              # lane-dense hidden width

    # Gate-blocked, zero-padded parameters.  Zero padding keeps the padded hidden lanes
    # exactly zero through the recurrence, so slicing [:H] at the end is exact.
    b_fold = b_ih + jnp.concatenate([b_hh[:2 * H], jnp.zeros((H,), b_hh.dtype)])
    w_ih_p = _pad_gate_cols(w_ih, H, Hp).astype(matmul_dtype)                    # (E, 3Hp)
    w_hh_p = jnp.pad(_pad_gate_cols(w_hh, H, Hp),
                     ((0, Hp - H), (0, 0))).astype(matmul_dtype)                 # (Hp, 3Hp)
    b_fold_p = _pad_gate_cols(b_fold[None, :], H, Hp).astype(jnp.float32)        # (1, 3Hp)
    b_hn_p = jnp.pad(b_hh[2 * H:][None, :],
                     ((0, 0), (0, Hp - H))).astype(jnp.float32)                  # (1, Hp)

    # Block / chunk sizing.  Sub-32-bit matmul operands pack 2x/4x per sublane, so the
    # batch block must be a multiple of the packed sublane count for cheap reshapes.
    mm_bytes = jnp.dtype(matmul_dtype).itemsize
    row_mult = _SUBLANE * max(1, 4 // mm_bytes)
    if batch_block is not None:
        Bb = _round_up(batch_block, row_mult)
        Bp = _round_up(B, Bb)
    else:
        Bb, Bp = _choose_batch_block(B, row_mult)
    Tc = time_chunk if time_chunk is not None else _choose_time_chunk(T, Bb, E, Hp, mm_bytes)
    Tp = _round_up(T, Tc)

    # Embedding gather, directly time-major (no (B,T,E) intermediate + transpose in HBM).
    # Dropout(p=0.0) is the identity.
    emb_tb = embed[text.T].astype(matmul_dtype)                                  # (T, B, E)
    emb_tb = jnp.pad(emb_tb, ((0, Tp - T), (0, Bp - B), (0, 0)))

    out_p = _gru_fused_pallas(emb_tb, w_ih_p, w_hh_p, b_fold_p, b_hn_p, Bb=Bb, Tc=Tc)

    # TODO(synk): write batch-first output directly from the kernel (per-chunk in-VMEM
    # transpose via pltpu.einshape) to also remove this final HBM transpose.
    # TODO(synk): for tiny vocabularies, gather from a precomputed gi_table instead of
    # projecting gathered embeddings (only a win when vocab << T*B).
    # TODO(synk): depth>1 would stack further recurrence passes; module default depth=1.
    return jnp.transpose(out_p[:T, :B, :H], (1, 0, 2))


# --------------------------------------------------------------------------------------
# Pure-JAX reference (standard unfused GRU) for correctness check
# --------------------------------------------------------------------------------------
def reference_forward(text, params):
    emb = params["embed"][text]                    # (B, T, E)
    B, T, E = emb.shape
    H = params["w_hh"].shape[0]
    w_ih, w_hh = params["w_ih"], params["w_hh"]
    b_ih, b_hh = params["b_ih"], params["b_hh"]

    def step(h, x_t):
        gi = x_t @ w_ih + b_ih
        gh = h @ w_hh + b_hh
        r = jax.nn.sigmoid(gi[:, :H] + gh[:, :H])
        z = jax.nn.sigmoid(gi[:, H:2 * H] + gh[:, H:2 * H])
        n = jnp.tanh(gi[:, 2 * H:] + r * gh[:, 2 * H:])
        h_new = (1.0 - z) * n + z * h
        return h_new, h_new

    h0 = jnp.zeros((B, H), jnp.float32)
    _, outs = lax.scan(step, h0, jnp.transpose(emb, (1, 0, 2)))
    return jnp.transpose(outs, (1, 0, 2))


# --------------------------------------------------------------------------------------
# Deterministic parameter init (shapes from the module's __init__)
# --------------------------------------------------------------------------------------
def init_params(key, size_feature, size, size_embed):
    kE, k1, k2, k3, k4 = jax.random.split(key, 5)
    bound = 1.0 / jnp.sqrt(size)
    embed = jax.random.normal(kE, (size_feature, size_embed), jnp.float32)
    # PyTorch stores weight_ih as (3H, E); we pre-transpose to (E, 3H) for x @ W.
    w_ih = jax.random.uniform(k1, (size_embed, 3 * size), jnp.float32, -bound, bound)
    w_hh = jax.random.uniform(k2, (size, 3 * size), jnp.float32, -bound, bound)
    b_ih = jax.random.uniform(k3, (3 * size,), jnp.float32, -bound, bound)
    b_hh = jax.random.uniform(k4, (3 * size,), jnp.float32, -bound, bound)
    return dict(embed=embed, w_ih=w_ih, w_hh=w_hh, b_ih=b_ih, b_hh=b_hh)


if __name__ == "__main__":
    # Small shapes consistent with the module: vocab=32, hidden(size)=32,
    # size_embed=64 (default), depth=1 (default), batch=2, seq=8.
    size_feature, size, size_embed = 32, 32, 64
    B, T = 2, 8

    key = jax.random.PRNGKey(0)
    kp, kt = jax.random.split(key)
    params = init_params(kp, size_feature, size, size_embed)
    text = jax.random.randint(kt, (B, T), 0, size_feature, dtype=jnp.int32)

    # f32 path (exact vs reference).
    out = jax.block_until_ready(text_encoder_bottom_forward(text, params))
    ref = jax.block_until_ready(reference_forward(text, params))
    assert out.shape == (B, T, size)
    assert jnp.allclose(out, ref, atol=1e-5, rtol=1e-5), "mismatch vs JAX reference (f32)"

    # bf16 matmul-operand path (v6e/v7x): f32 accumulation + f32 gate math preserved.
    out_bf16 = jax.block_until_ready(
        text_encoder_bottom_forward(text, params, matmul_dtype=jnp.bfloat16))
    assert out_bf16.shape == (B, T, size)
    assert jnp.allclose(out_bf16, ref, atol=5e-2, rtol=5e-2), "mismatch vs reference (bf16)"

    print("KERNEL_OK")
</pallas_src>

<mosaic_0001>
module attributes {stable_mosaic.version = 11 : i64} {
  func.func @_gru_fused_kernel(%arg0: i32, %arg1: i32, %arg2: memref<8x8x64xf32, #tpu.memory_space<vmem>>, %arg3: memref<64x384xf32, #tpu.memory_space<vmem>>, %arg4: memref<128x384xf32, #tpu.memory_space<vmem>>, %arg5: memref<1x384xf32, #tpu.memory_space<vmem>>, %arg6: memref<1x128xf32, #tpu.memory_space<vmem>>, %arg7: memref<8x8x128xf32, #tpu.memory_space<vmem>>, %arg8: memref<64x384xf32, #tpu.memory_space<vmem>>, %arg9: memref<8x128xf32, #tpu.memory_space<vmem>>) attributes {dimension_semantics = [#tpu.dimension_semantics<parallel>, #tpu.dimension_semantics<arbitrary>], iteration_bounds = array<i64: 1, 1>, scalar_prefetch = 0 : i64, scratch_operands = 2 : i64, tpu.core_type = #tpu.core_type<tc>, window_params = [{transform_indices = @transform_0, window_bounds = array<i64: 8, 8, 64>}, {pipeline_mode = #tpu.pipeline_mode<synchronous>, transform_indices = @transform_1, window_bounds = array<i64: 64, 384>}, {pipeline_mode = #tpu.pipeline_mode<synchronous>, transform_indices = @transform_2, window_bounds = array<i64: 128, 384>}, {pipeline_mode = #tpu.pipeline_mode<synchronous>, transform_indices = @transform_3, window_bounds = array<i64: 1, 384>}, {pipeline_mode = #tpu.pipeline_mode<synchronous>, transform_indices = @transform_4, window_bounds = array<i64: 1, 128>}, {transform_indices = @transform_5, window_bounds = array<i64: 8, 8, 128>}]} {
    %c0_i32 = arith.constant 0 : i32
    %0 = arith.cmpi eq, %arg1, %c0_i32 : i32
    %1 = arith.extui %0 : i1 to i32
    %c0_i32_0 = arith.constant 0 : i32
    %2 = arith.cmpi ne, %1, %c0_i32_0 : i32
    scf.if %2 {
      %cst_74 = arith.constant 0.000000e+00 : f32
      %289 = vector.broadcast %cst_74 : f32 to vector<8x128xf32>
      %c0_75 = arith.constant 0 : index
      %c0_76 = arith.constant 0 : index
      %290 = vector.load %arg9[%c0_75, %c0_76] : memref<8x128xf32, #tpu.memory_space<vmem>>, vector<8x128xf32>
      tpu.vector_store %arg9[%c0_75, %c0_76], %289 {strides = array<i32>} : memref<8x128xf32, #tpu.memory_space<vmem>>, vector<8x128xf32>,
    } else {
    }
    %c0 = arith.constant 0 : index
    %c0_1 = arith.constant 0 : index
    %c0_2 = arith.constant 0 : index
    %3 = vector.load %arg2[%c0, %c0_1, %c0_2] : memref<8x8x64xf32, #tpu.memory_space<vmem>>, vector<8x8x64xf32>
    %4 = vector.shape_cast %3 : vector<8x8x64xf32> to vector<64x64xf32>
    %c0_3 = arith.constant 0 : index
    %c0_4 = arith.constant 0 : index
    %5 = vector.load %arg3[%c0_3, %c0_4] : memref<64x384xf32, #tpu.memory_space<vmem>>, vector<64x384xf32>
    %cst = arith.constant dense<0.000000e+00> : vector<64x384xf32>
    %6 = tpu.matmul %4, %5, %cst {dimension_numbers = #tpu.dot_dimension_numbers<[1], [0], [0], [1], [0, 0, 1, 1], [], []>} : vector<64x64xf32>, vector<64x384xf32>, vector<64x384xf32> -> vector<64x384xf32>
    %c0_5 = arith.constant 0 : index
    %c0_6 = arith.constant 0 : index
    %7 = vector.load %arg5[%c0_5, %c0_6] : memref<1x384xf32, #tpu.memory_space<vmem>>, vector<1x384xf32>
    %8 = vector.broadcast %7 : vector<1x384xf32> to vector<64x384xf32>
    %9 = arith.addf %6, %8 : vector<64x384xf32>
    %c0_7 = arith.constant 0 : index
    %c0_8 = arith.constant 0 : index
    %10 = vector.load %arg8[%c0_7, %c0_8] : memref<64x384xf32, #tpu.memory_space<vmem>>, vector<64x384xf32>
    tpu.vector_store %arg8[%c0_7, %c0_8], %9 {strides = array<i32>} : memref<64x384xf32, #tpu.memory_space<vmem>>, vector<64x384xf32>,
    %c0_9 = arith.constant 0 : index
    %c0_10 = arith.constant 0 : index
    %11 = vector.load %arg4[%c0_9, %c0_10] : memref<128x384xf32, #tpu.memory_space<vmem>>, vector<128x384xf32>
    %c0_11 = arith.constant 0 : index
    %c0_12 = arith.constant 0 : index
    %12 = vector.load %arg6[%c0_11, %c0_12] : memref<1x128xf32, #tpu.memory_space<vmem>>, vector<1x128xf32>
    %13 = vector.shape_cast %12 : vector<1x128xf32> to vector<1x128xf32>
    %14 = vector.broadcast %13 : vector<1x128xf32> to vector<8x128xf32>
    %c0_13 = arith.constant 0 : index
    %c0_14 = arith.constant 0 : index
    %15 = vector.load %arg9[%c0_13, %c0_14] : memref<8x128xf32, #tpu.memory_space<vmem>>, vector<8x128xf32>
    %c0_i32_15 = arith.constant 0 : i32
    %c8_i32 = arith.constant 8 : i32
    %16 = arith.muli %c0_i32_15, %c8_i32 : i32
    %17 = tpu.assume_multiple %16, 8 : i32
    %18 = arith.index_cast %17 : i32 to index
    %c0_16 = arith.constant 0 : index
    %19 = vector.load %arg8[%18, %c0_16] : memref<64x384xf32, #tpu.memory_space<vmem>>, vector<8x384xf32>
    %cst_17 = arith.constant dense<0.000000e+00> : vector<8x384xf32>
    %20 = tpu.matmul %15, %11, %cst_17 {dimension_numbers = #tpu.dot_dimension_numbers<[1], [0], [0], [1], [0, 0, 1, 1], [], []>} : vector<8x128xf32>, vector<128x384xf32>, vector<8x384xf32> -> vector<8x384xf32>
    %21 = vector.extract_strided_slice %19 {offsets = [0, 0], sizes = [8, 128], strides = [1, 1]} : vector<8x384xf32> to vector<8x128xf32>
    %22 = vector.extract_strided_slice %20 {offsets = [0, 0], sizes = [8, 128], strides = [1, 1]} : vector<8x384xf32> to vector<8x128xf32>
    %23 = arith.addf %21, %22 : vector<8x128xf32>
    %24 = arith.negf %23 : vector<8x128xf32>
    %25 = math.exp %24 : vector<8x128xf32>
    %cst_18 = arith.constant 1.000000e+00 : f32
    %26 = vector.broadcast %cst_18 : f32 to vector<8x128xf32>
    %27 = arith.addf %26, %25 : vector<8x128xf32>
    %28 = arith.divf %26, %27 : vector<8x128xf32>
    %29 = vector.extract_strided_slice %19 {offsets = [0, 128], sizes = [8, 128], strides = [1, 1]} : vector<8x384xf32> to vector<8x128xf32>
    %30 = vector.extract_strided_slice %20 {offsets = [0, 128], sizes = [8, 128], strides = [1, 1]} : vector<8x384xf32> to vector<8x128xf32>
    %31 = arith.addf %29, %30 : vector<8x128xf32>
    %32 = arith.negf %31 : vector<8x128xf32>
    %33 = math.exp %32 : vector<8x128xf32>
    %cst_19 = arith.constant 1.000000e+00 : f32
    %34 = vector.broadcast %cst_19 : f32 to vector<8x128xf32>
    %35 = arith.addf %34, %33 : vector<8x128xf32>
    %36 = arith.divf %34, %35 : vector<8x128xf32>
    %37 = vector.extract_strided_slice %19 {offsets = [0, 256], sizes = [8, 128], strides = [1, 1]} : vector<8x384xf32> to vector<8x128xf32>
    %38 = vector.extract_strided_slice %20 {offsets = [0, 256], sizes = [8, 128], strides = [1, 1]} : vector<8x384xf32> to vector<8x128xf32>
    %39 = arith.addf %38, %14 : vector<8x128xf32>
    %40 = arith.mulf %28, %39 : vector<8x128xf32>
    %41 = arith.addf %37, %40 : vector<8x128xf32>
    %42 = math.tanh %41 : vector<8x128xf32>
    %43 = arith.subf %15, %42 : vector<8x128xf32>
    %44 = arith.mulf %36, %43 : vector<8x128xf32>
    %45 = arith.addf %42, %44 : vector<8x128xf32>
    %46 = arith.index_cast %c0_i32_15 : i32 to index
    %c0_20 = arith.constant 0 : index
    %c0_21 = arith.constant 0 : index
    %47 = vector.load %arg7[%46, %c0_20, %c0_21] : memref<8x8x128xf32, #tpu.memory_space<vmem>>, vector<1x8x128xf32>
    %48 = vector.shape_cast %47 : vector<1x8x128xf32> to vector<8x128xf32>
    %49 = vector.shape_cast %45 : vector<8x128xf32> to vector<1x8x128xf32>
    tpu.vector_store %arg7[%46, %c0_20, %c0_21], %49 {strides = array<i32>} : memref<8x8x128xf32, #tpu.memory_space<vmem>>, vector<1x8x128xf32>,
    %c1_i32 = arith.constant 1 : i32
    %c8_i32_22 = arith.constant 8 : i32
    %50 = arith.muli %c1_i32, %c8_i32_22 : i32
    %51 = tpu.assume_multiple %50, 8 : i32
    %52 = arith.index_cast %51 : i32 to index
    %c0_23 = arith.constant 0 : index
    %53 = vector.load %arg8[%52, %c0_23] : memref<64x384xf32, #tpu.memory_space<vmem>>, vector<8x384xf32>
    %cst_24 = arith.constant dense<0.000000e+00> : vector<8x384xf32>
    %54 = tpu.matmul %45, %11, %cst_24 {dimension_numbers = #tpu.dot_dimension_numbers<[1], [0], [0], [1], [0, 0, 1, 1], [], []>} : vector<8x128xf32>, vector<128x384xf32>, vector<8x384xf32> -> vector<8x384xf32>
    %55 = vector.extract_strided_slice %53 {offsets = [0, 0], sizes = [8, 128], strides = [1, 1]} : vector<8x384xf32> to vector<8x128xf32>
    %56 = vector.extract_strided_slice %54 {offsets = [0, 0], sizes = [8, 128], strides = [1, 1]} : vector<8x384xf32> to vector<8x128xf32>
    %57 = arith.addf %55, %56 : vector<8x128xf32>
    %58 = arith.negf %57 : vector<8x128xf32>
    %59 = math.exp %58 : vector<8x128xf32>
    %cst_25 = arith.constant 1.000000e+00 : f32
    %60 = vector.broadcast %cst_25 : f32 to vector<8x128xf32>
    %61 = arith.addf %60, %59 : vector<8x128xf32>
    %62 = arith.divf %60, %61 : vector<8x128xf32>
    %63 = vector.extract_strided_slice %53 {offsets = [0, 128], sizes = [8, 128], strides = [1, 1]} : vector<8x384xf32> to vector<8x128xf32>
    %64 = vector.extract_strided_slice %54 {offsets = [0, 128], sizes = [8, 128], strides = [1, 1]} : vector<8x384xf32> to vector<8x128xf32>
    %65 = arith.addf %63, %64 : vector<8x128xf32>
    %66 = arith.negf %65 : vector<8x128xf32>
    %67 = math.exp %66 : vector<8x128xf32>
    %cst_26 = arith.constant 1.000000e+00 : f32
    %68 = vector.broadcast %cst_26 : f32 to vector<8x128xf32>
    %69 = arith.addf %68, %67 : vector<8x128xf32>
    %70 = arith.divf %68, %69 : vector<8x128xf32>
    %71 = vector.extract_strided_slice %53 {offsets = [0, 256], sizes = [8, 128], strides = [1, 1]} : vector<8x384xf32> to vector<8x128xf32>
    %72 = vector.extract_strided_slice %54 {offsets = [0, 256], sizes = [8, 128], strides = [1, 1]} : vector<8x384xf32> to vector<8x128xf32>
    %73 = arith.addf %72, %14 : vector<8x128xf32>
    %74 = arith.mulf %62, %73 : vector<8x128xf32>
    %75 = arith.addf %71, %74 : vector<8x128xf32>
    %76 = math.tanh %75 : vector<8x128xf32>
    %77 = arith.subf %45, %76 : vector<8x128xf32>
    %78 = arith.mulf %70, %77 : vector<8x128xf32>
    %79 = arith.addf %76, %78 : vector<8x128xf32>
    %80 = arith.index_cast %c1_i32 : i32 to index
    %c0_27 = arith.constant 0 : index
    %c0_28 = arith.constant 0 : index
    %81 = vector.load %arg7[%80, %c0_27, %c0_28] : memref<8x8x128xf32, #tpu.memory_space<vmem>>, vector<1x8x128xf32>
    %82 = vector.shape_cast %81 : vector<1x8x128xf32> to vector<8x128xf32>
    %83 = vector.shape_cast %79 : vector<8x128xf32> to vector<1x8x128xf32>
    tpu.vector_store %arg7[%80, %c0_27, %c0_28], %83 {strides = array<i32>} : memref<8x8x128xf32, #tpu.memory_space<vmem>>, vector<1x8x128xf32>,
    %c2_i32 = arith.constant 2 : i32
    %c8_i32_29 = arith.constant 8 : i32
    %84 = arith.muli %c2_i32, %c8_i32_29 : i32
    %85 = tpu.assume_multiple %84, 8 : i32
    %86 = arith.index_cast %85 : i32 to index
    %c0_30 = arith.constant 0 : index
    %87 = vector.load %arg8[%86, %c0_30] : memref<64x384xf32, #tpu.memory_space<vmem>>, vector<8x384xf32>
    %cst_31 = arith.constant dense<0.000000e+00> : vector<8x384xf32>
    %88 = tpu.matmul %79, %11, %cst_31 {dimension_numbers = #tpu.dot_dimension_numbers<[1], [0], [0], [1], [0, 0, 1, 1], [], []>} : vector<8x128xf32>, vector<128x384xf32>, vector<8x384xf32> -> vector<8x384xf32>
    %89 = vector.extract_strided_slice %87 {offsets = [0, 0], sizes = [8, 128], strides = [1, 1]} : vector<8x384xf32> to vector<8x128xf32>
    %90 = vector.extract_strided_slice %88 {offsets = [0, 0], sizes = [8, 128], strides = [1, 1]} : vector<8x384xf32> to vector<8x128xf32>
    %91 = arith.addf %89, %90 : vector<8x128xf32>
    %92 = arith.negf %91 : vector<8x128xf32>
    %93 = math.exp %92 : vector<8x128xf32>
    %cst_32 = arith.constant 1.000000e+00 : f32
    %94 = vector.broadcast %cst_32 : f32 to vector<8x128xf32>
    %95 = arith.addf %94, %93 : vector<8x128xf32>
    %96 = arith.divf %94, %95 : vector<8x128xf32>
    %97 = vector.extract_strided_slice %87 {offsets = [0, 128], sizes = [8, 128], strides = [1, 1]} : vector<8x384xf32> to vector<8x128xf32>
    %98 = vector.extract_strided_slice %88 {offsets = [0, 128], sizes = [8, 128], strides = [1, 1]} : vector<8x384xf32> to vector<8x128xf32>
    %99 = arith.addf %97, %98 : vector<8x128xf32>
    %100 = arith.negf %99 : vector<8x128xf32>
    %101 = math.exp %100 : vector<8x128xf32>
    %cst_33 = arith.constant 1.000000e+00 : f32
    %102 = vector.broadcast %cst_33 : f32 to vector<8x128xf32>
    %103 = arith.addf %102, %101 : vector<8x128xf32>
    %104 = arith.divf %102, %103 : vector<8x128xf32>
    %105 = vector.extract_strided_slice %87 {offsets = [0, 256], sizes = [8, 128], strides = [1, 1]} : vector<8x384xf32> to vector<8x128xf32>
    %106 = vector.extract_strided_slice %88 {offsets = [0, 256], sizes = [8, 128], strides = [1, 1]} : vector<8x384xf32> to vector<8x128xf32>
    %107 = arith.addf %106, %14 : vector<8x128xf32>
    %108 = arith.mulf %96, %107 : vector<8x128xf32>
    %109 = arith.addf %105, %108 : vector<8x128xf32>
    %110 = math.tanh %109 : vector<8x128xf32>
    %111 = arith.subf %79, %110 : vector<8x128xf32>
    %112 = arith.mulf %104, %111 : vector<8x128xf32>
    %113 = arith.addf %110, %112 : vector<8x128xf32>
    %114 = arith.index_cast %c2_i32 : i32 to index
    %c0_34 = arith.constant 0 : index
    %c0_35 = arith.constant 0 : index
    %115 = vector.load %arg7[%114, %c0_34, %c0_35] : memref<8x8x128xf32, #tpu.memory_space<vmem>>, vector<1x8x128xf32>
    %116 = vector.shape_cast %115 : vector<1x8x128xf32> to vector<8x128xf32>
    %117 = vector.shape_cast %113 : vector<8x128xf32> to vector<1x8x128xf32>
    tpu.vector_store %arg7[%114, %c0_34, %c0_35], %117 {strides = array<i32>} : memref<8x8x128xf32, #tpu.memory_space<vmem>>, vector<1x8x128xf32>,
    %c3_i32 = arith.constant 3 : i32
    %c8_i32_36 = arith.constant 8 : i32
    %118 = arith.muli %c3_i32, %c8_i32_36 : i32
    %119 = tpu.assume_multiple %118, 8 : i32
    %120 = arith.index_cast %119 : i32 to index
    %c0_37 = arith.constant 0 : index
    %121 = vector.load %arg8[%120, %c0_37] : memref<64x384xf32, #tpu.memory_space<vmem>>, vector<8x384xf32>
    %cst_38 = arith.constant dense<0.000000e+00> : vector<8x384xf32>
    %122 = tpu.matmul %113, %11, %cst_38 {dimension_numbers = #tpu.dot_dimension_numbers<[1], [0], [0], [1], [0, 0, 1, 1], [], []>} : vector<8x128xf32>, vector<128x384xf32>, vector<8x384xf32> -> vector<8x384xf32>
    %123 = vector.extract_strided_slice %121 {offsets = [0, 0], sizes = [8, 128], strides = [1, 1]} : vector<8x384xf32> to vector<8x128xf32>
    %124 = vector.extract_strided_slice %122 {offsets = [0, 0], sizes = [8, 128], strides = [1, 1]} : vector<8x384xf32> to vector<8x128xf32>
    %125 = arith.addf %123, %124 : vector<8x128xf32>
    %126 = arith.negf %125 : vector<8x128xf32>
    %127 = math.exp %126 : vector<8x128xf32>
    %cst_39 = arith.constant 1.000000e+00 : f32
    %128 = vector.broadcast %cst_39 : f32 to vector<8x128xf32>
    %129 = arith.addf %128, %127 : vector<8x128xf32>
    %130 = arith.divf %128, %129 : vector<8x128xf32>
    %131 = vector.extract_strided_slice %121 {offsets = [0, 128], sizes = [8, 128], strides = [1, 1]} : vector<8x384xf32> to vector<8x128xf32>
    %132 = vector.extract_strided_slice %122 {offsets = [0, 128], sizes = [8, 128], strides = [1, 1]} : vector<8x384xf32> to vector<8x128xf32>
    %133 = arith.addf %131, %132 : vector<8x128xf32>
    %134 = arith.negf %133 : vector<8x128xf32>
    %135 = math.exp %134 : vector<8x128xf32>
    %cst_40 = arith.constant 1.000000e+00 : f32
    %136 = vector.broadcast %cst_40 : f32 to vector<8x128xf32>
    %137 = arith.addf %136, %135 : vector<8x128xf32>
    %138 = arith.divf %136, %137 : vector<8x128xf32>
    %139 = vector.extract_strided_slice %121 {offsets = [0, 256], sizes = [8, 128], strides = [1, 1]} : vector<8x384xf32> to vector<8x128xf32>
    %140 = vector.extract_strided_slice %122 {offsets = [0, 256], sizes = [8, 128], strides = [1, 1]} : vector<8x384xf32> to vector<8x128xf32>
    %141 = arith.addf %140, %14 : vector<8x128xf32>
    %142 = arith.mulf %130, %141 : vector<8x128xf32>
    %143 = arith.addf %139, %142 : vector<8x128xf32>
    %144 = math.tanh %143 : vector<8x128xf32>
    %145 = arith.subf %113, %144 : vector<8x128xf32>
    %146 = arith.mulf %138, %145 : vector<8x128xf32>
    %147 = arith.addf %144, %146 : vector<8x128xf32>
    %148 = arith.index_cast %c3_i32 : i32 to index
    %c0_41 = arith.constant 0 : index
    %c0_42 = arith.constant 0 : index
    %149 = vector.load %arg7[%148, %c0_41, %c0_42] : memref<8x8x128xf32, #tpu.memory_space<vmem>>, vector<1x8x128xf32>
    %150 = vector.shape_cast %149 : vector<1x8x128xf32> to vector<8x128xf32>
    %151 = vector.shape_cast %147 : vector<8x128xf32> to vector<1x8x128xf32>
    tpu.vector_store %arg7[%148, %c0_41, %c0_42], %151 {strides = array<i32>} : memref<8x8x128xf32, #tpu.memory_space<vmem>>, vector<1x8x128xf32>,
    %c4_i32 = arith.constant 4 : i32
    %c8_i32_43 = arith.constant 8 : i32
    %152 = arith.muli %c4_i32, %c8_i32_43 : i32
    %153 = tpu.assume_multiple %152, 8 : i32
    %154 = arith.index_cast %153 : i32 to index
    %c0_44 = arith.constant 0 : index
    %155 = vector.load %arg8[%154, %c0_44] : memref<64x384xf32, #tpu.memory_space<vmem>>, vector<8x384xf32>
    %cst_45 = arith.constant dense<0.000000e+00> : vector<8x384xf32>
    %156 = tpu.matmul %147, %11, %cst_45 {dimension_numbers = #tpu.dot_dimension_numbers<[1], [0], [0], [1], [0, 0, 1, 1], [], []>} : vector<8x128xf32>, vector<128x384xf32>, vector<8x384xf32> -> vector<8x384xf32>
    %157 = vector.extract_strided_slice %155 {offsets = [0, 0], sizes = [8, 128], strides = [1, 1]} : vector<8x384xf32> to vector<8x128xf32>
    %158 = vector.extract_strided_slice %156 {offsets = [0, 0], sizes = [8, 128], strides = [1, 1]} : vector<8x384xf32> to vector<8x128xf32>
    %159 = arith.addf %157, %158 : vector<8x128xf32>
    %160 = arith.negf %159 : vector<8x128xf32>
    %161 = math.exp %160 : vector<8x128xf32>
    %cst_46 = arith.constant 1.000000e+00 : f32
    %162 = vector.broadcast %cst_46 : f32 to vector<8x128xf32>
    %163 = arith.addf %162, %161 : vector<8x128xf32>
    %164 = arith.divf %162, %163 : vector<8x128xf32>
    %165 = vector.extract_strided_slice %155 {offsets = [0, 128], sizes = [8, 128], strides = [1, 1]} : vector<8x384xf32> to vector<8x128xf32>
    %166 = vector.extract_strided_slice %156 {offsets = [0, 128], sizes = [8, 128], strides = [1, 1]} : vector<8x384xf32> to vector<8x128xf32>
    %167 = arith.addf %165, %166 : vector<8x128xf32>
    %168 = arith.negf %167 : vector<8x128xf32>
    %169 = math.exp %168 : vector<8x128xf32>
    %cst_47 = arith.constant 1.000000e+00 : f32
    %170 = vector.broadcast %cst_47 : f32 to vector<8x128xf32>
    %171 = arith.addf %170, %169 : vector<8x128xf32>
    %172 = arith.divf %170, %171 : vector<8x128xf32>
    %173 = vector.extract_strided_slice %155 {offsets = [0, 256], sizes = [8, 128], strides = [1, 1]} : vector<8x384xf32> to vector<8x128xf32>
    %174 = vector.extract_strided_slice %156 {offsets = [0, 256], sizes = [8, 128], strides = [1, 1]} : vector<8x384xf32> to vector<8x128xf32>
    %175 = arith.addf %174, %14 : vector<8x128xf32>
    %176 = arith.mulf %164, %175 : vector<8x128xf32>
    %177 = arith.addf %173, %176 : vector<8x128xf32>
    %178 = math.tanh %177 : vector<8x128xf32>
    %179 = arith.subf %147, %178 : vector<8x128xf32>
    %180 = arith.mulf %172, %179 : vector<8x128xf32>
    %181 = arith.addf %178, %180 : vector<8x128xf32>
    %182 = arith.index_cast %c4_i32 : i32 to index
    %c0_48 = arith.constant 0 : index
    %c0_49 = arith.constant 0 : index
    %183 = vector.load %arg7[%182, %c0_48, %c0_49] : memref<8x8x128xf32, #tpu.memory_space<vmem>>, vector<1x8x128xf32>
    %184 = vector.shape_cast %183 : vector<1x8x128xf32> to vector<8x128xf32>
    %185 = vector.shape_cast %181 : vector<8x128xf32> to vector<1x8x128xf32>
    tpu.vector_store %arg7[%182, %c0_48, %c0_49], %185 {strides = array<i32>} : memref<8x8x128xf32, #tpu.memory_space<vmem>>, vector<1x8x128xf32>,
    %c5_i32 = arith.constant 5 : i32
    %c8_i32_50 = arith.constant 8 : i32
    %186 = arith.muli %c5_i32, %c8_i32_50 : i32
    %187 = tpu.assume_multiple %186, 8 : i32
    %188 = arith.index_cast %187 : i32 to index
    %c0_51 = arith.constant 0 : index
    %189 = vector.load %arg8[%188, %c0_51] : memref<64x384xf32, #tpu.memory_space<vmem>>, vector<8x384xf32>
    %cst_52 = arith.constant dense<0.000000e+00> : vector<8x384xf32>
    %190 = tpu.matmul %181, %11, %cst_52 {dimension_numbers = #tpu.dot_dimension_numbers<[1], [0], [0], [1], [0, 0, 1, 1], [], []>} : vector<8x128xf32>, vector<128x384xf32>, vector<8x384xf32> -> vector<8x384xf32>
    %191 = vector.extract_strided_slice %189 {offsets = [0, 0], sizes = [8, 128], strides = [1, 1]} : vector<8x384xf32> to vector<8x128xf32>
    %192 = vector.extract_strided_slice %190 {offsets = [0, 0], sizes = [8, 128], strides = [1, 1]} : vector<8x384xf32> to vector<8x128xf32>
    %193 = arith.addf %191, %192 : vector<8x128xf32>
    %194 = arith.negf %193 : vector<8x128xf32>
    %195 = math.exp %194 : vector<8x128xf32>
    %cst_53 = arith.constant 1.000000e+00 : f32
    %196 = vector.broadcast %cst_53 : f32 to vector<8x128xf32>
    %197 = arith.addf %196, %195 : vector<8x128xf32>
    %198 = arith.divf %196, %197 : vector<8x128xf32>
    %199 = vector.extract_strided_slice %189 {offsets = [0, 128], sizes = [8, 128], strides = [1, 1]} : vector<8x384xf32> to vector<8x128xf32>
    %200 = vector.extract_strided_slice %190 {offsets = [0, 128], sizes = [8, 128], strides = [1, 1]} : vector<8x384xf32> to vector<8x128xf32>
    %201 = arith.addf %199, %200 : vector<8x128xf32>
    %202 = arith.negf %201 : vector<8x128xf32>
    %203 = math.exp %202 : vector<8x128xf32>
    %cst_54 = arith.constant 1.000000e+00 : f32
    %204 = vector.broadcast %cst_54 : f32 to vector<8x128xf32>
    %205 = arith.addf %204, %203 : vector<8x128xf32>
    %206 = arith.divf %204, %205 : vector<8x128xf32>
    %207 = vector.extract_strided_slice %189 {offsets = [0, 256], sizes = [8, 128], strides = [1, 1]} : vector<8x384xf32> to vector<8x128xf32>
    %208 = vector.extract_strided_slice %190 {offsets = [0, 256], sizes = [8, 128], strides = [1, 1]} : vector<8x384xf32> to vector<8x128xf32>
    %209 = arith.addf %208, %14 : vector<8x128xf32>
    %210 = arith.mulf %198, %209 : vector<8x128xf32>
    %211 = arith.addf %207, %210 : vector<8x128xf32>
    %212 = math.tanh %211 : vector<8x128xf32>
    %213 = arith.subf %181, %212 : vector<8x128xf32>
    %214 = arith.mulf %206, %213 : vector<8x128xf32>
    %215 = arith.addf %212, %214 : vector<8x128xf32>
    %216 = arith.index_cast %c5_i32 : i32 to index
    %c0_55 = arith.constant 0 : index
    %c0_56 = arith.constant 0 : index
    %217 = vector.load %arg7[%216, %c0_55, %c0_56] : memref<8x8x128xf32, #tpu.memory_space<vmem>>, vector<1x8x128xf32>
    %218 = vector.shape_cast %217 : vector<1x8x128xf32> to vector<8x128xf32>
    %219 = vector.shape_cast %215 : vector<8x128xf32> to vector<1x8x128xf32>
    tpu.vector_store %arg7[%216, %c0_55, %c0_56], %219 {strides = array<i32>} : memref<8x8x128xf32, #tpu.memory_space<vmem>>, vector<1x8x128xf32>,
    %c6_i32 = arith.constant 6 : i32
    %c8_i32_57 = arith.constant 8 : i32
    %220 = arith.muli %c6_i32, %c8_i32_57 : i32
    %221 = tpu.assume_multiple %220, 8 : i32
    %222 = arith.index_cast %221 : i32 to index
    %c0_58 = arith.constant 0 : index
    %223 = vector.load %arg8[%222, %c0_58] : memref<64x384xf32, #tpu.memory_space<vmem>>, vector<8x384xf32>
    %cst_59 = arith.constant dense<0.000000e+00> : vector<8x384xf32>
    %224 = tpu.matmul %215, %11, %cst_59 {dimension_numbers = #tpu.dot_dimension_numbers<[1], [0], [0], [1], [0, 0, 1, 1], [], []>} : vector<8x128xf32>, vector<128x384xf32>, vector<8x384xf32> -> vector<8x384xf32>
    %225 = vector.extract_strided_slice %223 {offsets = [0, 0], sizes = [8, 128], strides = [1, 1]} : vector<8x384xf32> to vector<8x128xf32>
    %226 = vector.extract_strided_slice %224 {offsets = [0, 0], sizes = [8, 128], strides = [1, 1]} : vector<8x384xf32> to vector<8x128xf32>
    %227 = arith.addf %225, %226 : vector<8x128xf32>
    %228 = arith.negf %227 : vector<8x128xf32>
    %229 = math.exp %228 : vector<8x128xf32>
    %cst_60 = arith.constant 1.000000e+00 : f32
    %230 = vector.broadcast %cst_60 : f32 to vector<8x128xf32>
    %231 = arith.addf %230, %229 : vector<8x128xf32>
    %232 = arith.divf %230, %231 : vector<8x128xf32>
    %233 = vector.extract_strided_slice %223 {offsets = [0, 128], sizes = [8, 128], strides = [1, 1]} : vector<8x384xf32> to vector<8x128xf32>
    %234 = vector.extract_strided_slice %224 {offsets = [0, 128], sizes = [8, 128], strides = [1, 1]} : vector<8x384xf32> to vector<8x128xf32>
    %235 = arith.addf %233, %234 : vector<8x128xf32>
    %236 = arith.negf %235 : vector<8x128xf32>
    %237 = math.exp %236 : vector<8x128xf32>
    %cst_61 = arith.constant 1.000000e+00 : f32
    %238 = vector.broadcast %cst_61 : f32 to vector<8x128xf32>
    %239 = arith.addf %238, %237 : vector<8x128xf32>
    %240 = arith.divf %238, %239 : vector<8x128xf32>
    %241 = vector.extract_strided_slice %223 {offsets = [0, 256], sizes = [8, 128], strides = [1, 1]} : vector<8x384xf32> to vector<8x128xf32>
    %242 = vector.extract_strided_slice %224 {offsets = [0, 256], sizes = [8, 128], strides = [1, 1]} : vector<8x384xf32> to vector<8x128xf32>
    %243 = arith.addf %242, %14 : vector<8x128xf32>
    %244 = arith.mulf %232, %243 : vector<8x128xf32>
    %245 = arith.addf %241, %244 : vector<8x128xf32>
    %246 = math.tanh %245 : vector<8x128xf32>
    %247 = arith.subf %215, %246 : vector<8x128xf32>
    %248 = arith.mulf %240, %247 : vector<8x128xf32>
    %249 = arith.addf %246, %248 : vector<8x128xf32>
    %250 = arith.index_cast %c6_i32 : i32 to index
    %c0_62 = arith.constant 0 : index
    %c0_63 = arith.constant 0 : index
    %251 = vector.load %arg7[%250, %c0_62, %c0_63] : memref<8x8x128xf32, #tpu.memory_space<vmem>>, vector<1x8x128xf32>
    %252 = vector.shape_cast %251 : vector<1x8x128xf32> to vector<8x128xf32>
    %253 = vector.shape_cast %249 : vector<8x128xf32> to vector<1x8x128xf32>
    tpu.vector_store %arg7[%250, %c0_62, %c0_63], %253 {strides = array<i32>} : memref<8x8x128xf32, #tpu.memory_space<vmem>>, vector<1x8x128xf32>,
    %c7_i32 = arith.constant 7 : i32
    %c8_i32_64 = arith.constant 8 : i32
    %254 = arith.muli %c7_i32, %c8_i32_64 : i32
    %255 = tpu.assume_multiple %254, 8 : i32
    %256 = arith.index_cast %255 : i32 to index
    %c0_65 = arith.constant 0 : index
    %257 = vector.load %arg8[%256, %c0_65] : memref<64x384xf32, #tpu.memory_space<vmem>>, vector<8x384xf32>
    %cst_66 = arith.constant dense<0.000000e+00> : vector<8x384xf32>
    %258 = tpu.matmul %249, %11, %cst_66 {dimension_numbers = #tpu.dot_dimension_numbers<[1], [0], [0], [1], [0, 0, 1, 1], [], []>} : vector<8x128xf32>, vector<128x384xf32>, vector<8x384xf32> -> vector<8x384xf32>
    %259 = vector.extract_strided_slice %257 {offsets = [0, 0], sizes = [8, 128], strides = [1, 1]} : vector<8x384xf32> to vector<8x128xf32>
    %260 = vector.extract_strided_slice %258 {offsets = [0, 0], sizes = [8, 128], strides = [1, 1]} : vector<8x384xf32> to vector<8x128xf32>
    %261 = arith.addf %259, %260 : vector<8x128xf32>
    %262 = arith.negf %261 : vector<8x128xf32>
    %263 = math.exp %262 : vector<8x128xf32>
    %cst_67 = arith.constant 1.000000e+00 : f32
    %264 = vector.broadcast %cst_67 : f32 to vector<8x128xf32>
    %265 = arith.addf %264, %263 : vector<8x128xf32>
    %266 = arith.divf %264, %265 : vector<8x128xf32>
    %267 = vector.extract_strided_slice %257 {offsets = [0, 128], sizes = [8, 128], strides = [1, 1]} : vector<8x384xf32> to vector<8x128xf32>
    %268 = vector.extract_strided_slice %258 {offsets = [0, 128], sizes = [8, 128], strides = [1, 1]} : vector<8x384xf32> to vector<8x128xf32>
    %269 = arith.addf %267, %268 : vector<8x128xf32>
    %270 = arith.negf %269 : vector<8x128xf32>
    %271 = math.exp %270 : vector<8x128xf32>
    %cst_68 = arith.constant 1.000000e+00 : f32
    %272 = vector.broadcast %cst_68 : f32 to vector<8x128xf32>
    %273 = arith.addf %272, %271 : vector<8x128xf32>
    %274 = arith.divf %272, %273 : vector<8x128xf32>
    %275 = vector.extract_strided_slice %257 {offsets = [0, 256], sizes = [8, 128], strides = [1, 1]} : vector<8x384xf32> to vector<8x128xf32>
    %276 = vector.extract_strided_slice %258 {offsets = [0, 256], sizes = [8, 128], strides = [1, 1]} : vector<8x384xf32> to vector<8x128xf32>
    %277 = arith.addf %276, %14 : vector<8x128xf32>
    %278 = arith.mulf %266, %277 : vector<8x128xf32>
    %279 = arith.addf %275, %278 : vector<8x128xf32>
    %280 = math.tanh %279 : vector<8x128xf32>
    %281 = arith.subf %249, %280 : vector<8x128xf32>
    %282 = arith.mulf %274, %281 : vector<8x128xf32>
    %283 = arith.addf %280, %282 : vector<8x128xf32>
    %284 = arith.index_cast %c7_i32 : i32 to index
    %c0_69 = arith.constant 0 : index
    %c0_70 = arith.constant 0 : index
    %285 = vector.load %arg7[%284, %c0_69, %c0_70] : memref<8x8x128xf32, #tpu.memory_space<vmem>>, vector<1x8x128xf32>
    %286 = vector.shape_cast %285 : vector<1x8x128xf32> to vector<8x128xf32>
    %287 = vector.shape_cast %283 : vector<8x128xf32> to vector<1x8x128xf32>
    tpu.vector_store %arg7[%284, %c0_69, %c0_70], %287 {strides = array<i32>} : memref<8x8x128xf32, #tpu.memory_space<vmem>>, vector<1x8x128xf32>,
    %c8_i32_71 = arith.constant 8 : i32
    %c0_72 = arith.constant 0 : index
    %c0_73 = arith.constant 0 : index
    %288 = vector.load %arg9[%c0_72, %c0_73] : memref<8x128xf32, #tpu.memory_space<vmem>>, vector<8x128xf32>
    tpu.vector_store %arg9[%c0_72, %c0_73], %283 {strides = array<i32>} : memref<8x128xf32, #tpu.memory_space<vmem>>, vector<8x128xf32>,
    return
  }
  func.func @transform_0(%arg0: i32, %arg1: i32) -> (i32, i32, i32) {
    %c0_i32 = arith.constant 0 : i32
    %c0_i32_0 = arith.constant 0 : i32
    return %arg1, %arg0, %c0_i32 : i32, i32, i32
  }
  func.func @transform_1(%arg0: i32, %arg1: i32) -> (i32, i32) {
    %c0_i32 = arith.constant 0 : i32
    %c0_i32_0 = arith.constant 0 : i32
    %c0_i32_1 = arith.constant 0 : i32
    return %c0_i32, %c0_i32_0 : i32, i32
  }
  func.func @transform_2(%arg0: i32, %arg1: i32) -> (i32, i32) {
    %c0_i32 = arith.constant 0 : i32
    %c0_i32_0 = arith.constant 0 : i32
    %c0_i32_1 = arith.constant 0 : i32
    return %c0_i32, %c0_i32_0 : i32, i32
  }
  func.func @transform_3(%arg0: i32, %arg1: i32) -> (i32, i32) {
    %c0_i32 = arith.constant 0 : i32
    %c0_i32_0 = arith.constant 0 : i32
    %c0_i32_1 = arith.constant 0 : i32
    return %c0_i32, %c0_i32_0 : i32, i32
  }
  func.func @transform_4(%arg0: i32, %arg1: i32) -> (i32, i32) {
    %c0_i32 = arith.constant 0 : i32
    %c0_i32_0 = arith.constant 0 : i32
    %c0_i32_1 = arith.constant 0 : i32
    return %c0_i32, %c0_i32_0 : i32, i32
  }
  func.func @transform_5(%arg0: i32, %arg1: i32) -> (i32, i32, i32) {
    %c0_i32 = arith.constant 0 : i32
    %c0_i32_0 = arith.constant 0 : i32
    return %arg1, %arg0, %c0_i32 : i32, i32, i32
  }
}

</mosaic_0001>

<llo_original>
// kernel: tpu_custom_call.1
$region0: #{tpu_custom_call.1}
  #allocation0 [shape = 'u32[]', space=smem, size = 0x4, offset = 0x4, fixed_abs, tag = 'smem constant byte address 0x4 - core index']
  #allocation1 [shape = 'u32[144,128]{1,0:T(1,128)}', space=vmem, size = 0x12000, scoped, tag = 'internal scratch']
  #allocation2 [shape = 'f32[64,384]{1,0:T(8,128)}', space=vmem, size = 0x18000, scoped, tag = 'scratch operand']
  #allocation3 [shape = 'f32[8,128]{1,0:T(8,128)}', space=vmem, size = 0x1000, scoped, tag = 'scratch operand']
  %s0 = inlined_call_operand.hbm [shape: f32[8,8,64], index: 0, kind: input, shape index: {}]
  %s1 = inlined_call_operand.hbm [shape: f32[64,384], index: 1, kind: input, shape index: {}]
  %s2 = inlined_call_operand.hbm [shape: f32[128,384], index: 2, kind: input, shape index: {}]
  %s3 = inlined_call_operand.vmem [shape: f32[1,384], index: 3, kind: input, shape index: {}]
  %s4 = inlined_call_operand.vmem [shape: f32[1,128], index: 4, kind: input, shape index: {}]
  %s5 = inlined_call_operand.hbm [shape: f32[8,8,128], index: 5, kind: output, shape index: {}]
  %s6 = sld [smem:[#allocation0]]
  $region46: #{tpu_custom_call.1} parent=0
    _
  %s8 = ssub.s32 1, %s6
  %s9 = scalar_select 0, %s8, %s6
  $region1: #{tpu_custom_call.1} parent=0
    #allocation4 [shape = 'u8[32768]{0}', space=vmem, size = 0x8000, scoped, tag = 'input window, operand 0, single buffered']
    #allocation5 [shape = 's32[1]{0}', space=sflag, size = 0x4, scoped, tag = 'scoped memory for tpu_custom_call.1']
    #allocation6 [shape = 's32[1]{0}', space=sflag, size = 0x4, scoped, tag = 'scoped memory for tpu_custom_call.1']
    #allocation7 [shape = 'u8[98304]{0}', space=vmem, size = 0x18000, scoped, tag = 'input window, operand 1, single buffered']
    #allocation8 [shape = 's32[1]{0}', space=sflag, size = 0x4, scoped, tag = 'scoped memory for tpu_custom_call.1']
    #allocation9 [shape = 'u8[196608]{0}', space=vmem, size = 0x30000, scoped, tag = 'input window, operand 2, single buffered']
    #allocation10 [shape = 'u8[32768]{0}', space=vmem, size = 0x8000, scoped, tag = 'output window, operand 0, single buffered']
    %10 = vsyncpa [#allocation5], 0
    %11 = vsyncpa [#allocation8], 0
    %12 = vsyncpa [#allocation6], 0
    // Predicated region
    $region2: #{tpu_custom_call.1} parent=1 // pred_check
      _
    $region3: #{tpu_custom_call.1} parent=1 // pred_check_branch
      %14 = sbr.rel (0) target = $region5
    $region4: #{tpu_custom_call.1} parent=1 // pred_region
      %s16 = ssub.s32 1024, 1024
      %17 = vsyncadd [#allocation5], %s16
      %s18 = sshll.u32 [#allocation4], 4
      %s19 = int_to_ptr.vmem [resolvable:$true] %s18
      %24 = dma.hbm_to_vmem [thread:$0]  %s0, 1024, %s19, [#allocation5], 128, 128, 8
    $region5: #{tpu_custom_call.1} parent=1 // pred_fallthru
      _
    // Predicated region
    $region6: #{tpu_custom_call.1} parent=1 // pred_check
      _
    $region7: #{tpu_custom_call.1} parent=1 // pred_check_branch
      %26 = sbr.rel (0) target = $region9
    $region8: #{tpu_custom_call.1} parent=1 // pred_region
      %s28 = ssub.s32 3072, 3072
      %29 = vsyncadd [#allocation8], %s28
      %s30 = sshll.u32 [#allocation7], 4
      %s31 = int_to_ptr.vmem [resolvable:$true] %s30
      %36 = dma.hbm_to_vmem [thread:$0]  %s1, 3072, %s31, [#allocation8], 384, 384, 24
    $region9: #{tpu_custom_call.1} parent=1 // pred_fallthru
      _
    // Predicated region
    $region10: #{tpu_custom_call.1} parent=1 // pred_check
      _
    $region11: #{tpu_custom_call.1} parent=1 // pred_check_branch
      %38 = sbr.rel (0) target = $region13
    $region12: #{tpu_custom_call.1} parent=1 // pred_region
      %s40 = ssub.s32 6144, 6144
      %41 = vsyncadd [#allocation8], %s40
      %s42 = sshll.u32 [#allocation9], 4
      %s43 = int_to_ptr.vmem [resolvable:$true] %s42
      %48 = dma.hbm_to_vmem [thread:$0]  %s2, 6144, %s43, [#allocation8], 384, 384, 24
    $region13: #{tpu_custom_call.1} parent=1 // pred_fallthru
      _
    // Predicated region
    $region14: #{tpu_custom_call.1} parent=1 // pred_check
      _
    $region15: #{tpu_custom_call.1} parent=1 // pred_check_branch
      %50 = sbr.rel (0) target = $region17
    $region16: #{tpu_custom_call.1} parent=1 // pred_region
      _
    $region17: #{tpu_custom_call.1} parent=1 // pred_fallthru
      _
    // Predicated region
    $region18: #{tpu_custom_call.1} parent=1 // pred_check
      _
    $region19: #{tpu_custom_call.1} parent=1 // pred_check_branch
      %52 = sbr.rel (0) target = $region21
    $region20: #{tpu_custom_call.1} parent=1 // pred_region
      _
    $region21: #{tpu_custom_call.1} parent=1 // pred_fallthru
      _
    // Predicated region
    $region22: #{tpu_custom_call.1} parent=1 // pred_check
      _
    $region23: #{tpu_custom_call.1} parent=1 // pred_check_branch
      %54 = sbr.rel (0) target = $region25
    $region24: #{tpu_custom_call.1} parent=1 // pred_region
      %55 = dma.done [#allocation5], 1024
    $region25: #{tpu_custom_call.1} parent=1 // pred_fallthru
      _
    // Predicated region
    $region26: #{tpu_custom_call.1} parent=1 // pred_check
      _
    $region27: #{tpu_custom_call.1} parent=1 // pred_check_branch
      %57 = sbr.rel (0) target = $region29
    $region28: #{tpu_custom_call.1} parent=1 // pred_region
      %58 = dma.done [#allocation8], 3072
    $region29: #{tpu_custom_call.1} parent=1 // pred_fallthru
      _
    // Predicated region
    $region30: #{tpu_custom_call.1} parent=1 // pred_check
      _
    $region31: #{tpu_custom_call.1} parent=1 // pred_check_branch
      %60 = sbr.rel (0) target = $region33
    $region32: #{tpu_custom_call.1} parent=1 // pred_region
      %61 = dma.done [#allocation8], 6144
    $region33: #{tpu_custom_call.1} parent=1 // pred_fallthru
      _
    %p62 = scmp.eq.s32.totalorder 0, 0
    // Predicated region
    $region34: #{tpu_custom_call.1} parent=1 // pred_check
      %p63 = pneg %p62
    $region35: #{tpu_custom_call.1} parent=1 // pred_check_branch
      %65 = sbr.rel (%p63) target = $region37
    $region36: #{tpu_custom_call.1} parent=1 // pred_region
      %66 = vst [vmem:[#allocation3] sm:$0xff] 0.0
    $region37: #{tpu_custom_call.1} parent=1 // pred_fallthru
      _
    %v67 = vld [vmem:[#allocation4] sm:$0xff]
    %v68 = vld [vmem:[#allocation4 + $0x8] sm:$0xff]
    %v69 = vld [vmem:[#allocation4 + $0x10] sm:$0xff]
    %v70 = vld [vmem:[#allocation4 + $0x18] sm:$0xff]
    %v71 = vld [vmem:[#allocation4 + $0x20] sm:$0xff]
    %v72 = vld [vmem:[#allocation4 + $0x28] sm:$0xff]
    %v73 = vld [vmem:[#allocation4 + $0x30] sm:$0xff]
    %v74 = vld [vmem:[#allocation4 + $0x38] sm:$0xff]
    %v75 = vld [vmem:[#allocation7] sm:$0xff]
    %v76 = vld [vmem:[#allocation7 + $0x8] sm:$0xff]
    %v77 = vld [vmem:[#allocation7 + $0x10] sm:$0xff]
    %v78 = vld [vmem:[#allocation7 + $0x18] sm:$0xff]
    %v79 = vld [vmem:[#allocation7 + $0x20] sm:$0xff]
    %v80 = vld [vmem:[#allocation7 + $0x28] sm:$0xff]
    %v81 = vld [vmem:[#allocation7 + $0x30] sm:$0xff]
    %v82 = vld [vmem:[#allocation7 + $0x38] sm:$0xff]
    %v83 = vld [vmem:[#allocation7 + $0x40] sm:$0xff]
    %v84 = vld [vmem:[#allocation7 + $0x48] sm:$0xff]
    %v85 = vld [vmem:[#allocation7 + $0x50] sm:$0xff]
    %v86 = vld [vmem:[#allocation7 + $0x58] sm:$0xff]
    %v87 = vld [vmem:[#allocation7 + $0x60] sm:$0xff]
    %v88 = vld [vmem:[#allocation7 + $0x68] sm:$0xff]
    %v89 = vld [vmem:[#allocation7 + $0x70] sm:$0xff]
    %v90 = vld [vmem:[#allocation7 + $0x78] sm:$0xff]
    %v91 = vld [vmem:[#allocation7 + $0x80] sm:$0xff]
    %v92 = vld [vmem:[#allocation7 + $0x88] sm:$0xff]
    %v93 = vld [vmem:[#allocation7 + $0x90] sm:$0xff]
    %v94 = vld [vmem:[#allocation7 + $0x98] sm:$0xff]
    %v95 = vld [vmem:[#allocation7 + $0xa0] sm:$0xff]
    %v96 = vld [vmem:[#allocation7 + $0xa8] sm:$0xff]
    %v97 = vld [vmem:[#allocation7 + $0xb0] sm:$0xff]
    %v98 = vld [vmem:[#allocation7 + $0xb8] sm:$0xff]
    %v99 = vld [vmem:[%s3] sm:$0x7]
    %v101 = vlaneseq
    %v102 = vshrl.u32 %v101, 7
    %v103 = vsub.s32 0, %v102
    %v104 = vrot.slane %v99, %v103
    %v105 = vlaneseq
    %v106 = vshrl.u32 %v105, 7
    %v107 = vsub.s32 1, %v106
    %v108 = vrot.slane %v99, %v107
    %v109 = vlaneseq
    %v110 = vshrl.u32 %v109, 7
    %v111 = vsub.s32 2, %v110
    %v112 = vrot.slane %v99, %v111
    %vm116 = vcmask 523264
    %v118 = vsel %vm116, %v67, 0
    %v121 = vsel %vm116, %v68, 0
    %v124 = vsel %vm116, %v69, 0
    %v127 = vsel %vm116, %v70, 0
    %v130 = vsel %vm116, %v71, 0
    %v133 = vsel %vm116, %v72, 0
    %v136 = vsel %vm116, %v73, 0
    %v139 = vsel %vm116, %v74, 0
    %141 = vmatprep.subr.mxu0 %v76
    %142 = vmatpush1.msra.mxu0 %v75
    %143 = vmatprep.subr.mxu0 %v79
    %144 = vmatpush1.msra.mxu0 %v78
    %145 = vmatprep.subr.mxu0 %v82
    %146 = vmatpush1.msra.mxu0 %v81
    %147 = vmatprep.subr.mxu0 %v85
    %148 = vmatpush1.msra.mxu0 %v84
    %149 = vmatprep.subr.mxu0 %v88
    %150 = vmatpush1.msra.mxu0 %v87
    %151 = vmatprep.subr.mxu0 %v91
    %152 = vmatpush1.msra.mxu0 %v90
    %153 = vmatprep.subr.mxu0 %v94
    %154 = vmatpush1.msra.mxu0 %v93
    %155 = vmatprep.subr.mxu0 %v97
    %156 = vmatpush1.msra.mxu0 %v96
    %157 = vmatprep.subr.mxu0 0.0
    %158 = vmatpush1.msra.mxu0 0.0
    %159 = vmatprep.subr.mxu0 0.0
    %160 = vmatpush1.msra.mxu0 0.0
    %161 = vmatprep.subr.mxu0 0.0
    %162 = vmatpush1.msra.mxu0 0.0
    %163 = vmatprep.subr.mxu0 0.0
    %164 = vmatpush1.msra.mxu0 0.0
    %165 = vmatprep.subr.mxu0 0.0
    %166 = vmatpush1.msra.mxu0 0.0
    %167 = vmatprep.subr.mxu0 0.0
    %168 = vmatpush1.msra.mxu0 0.0
    %169 = vmatprep.subr.mxu0 0.0
    %170 = vmatpush1.msra.mxu0 0.0
    %171 = vmatprep.subr.mxu0 0.0
    %172 = vmatpush1.msra.mxu0 0.0
    %173 = vmatprep.subr.mxu0 0.0
    %174 = vmatpush1.msra.mxu0 0.0
    %175 = vmatprep.subr.mxu0 0.0
    %176 = vmatpush1.msra.mxu0 0.0
    %177 = vmatprep.subr.mxu0 0.0
    %178 = vmatpush1.msra.mxu0 0.0
    %179 = vmatprep.subr.mxu0 0.0
    %180 = vmatpush1.msra.mxu0 0.0
    %181 = vmatprep.subr.mxu0 0.0
    %182 = vmatpush1.msra.mxu0 0.0
    %183 = vmatprep.subr.mxu0 0.0
    %184 = vmatpush1.msra.mxu0 0.0
    %185 = vmatprep.subr.mxu0 0.0
    %186 = vmatpush1.msra.mxu0 0.0
    %187 = vmatprep.subr.mxu0 0.0
    %188 = vmatpush1.msra.mxu0 0.0
    %189 = vmatprep.subr.mxu0 0.0
    %190 = vmatpush1.msra.mxu0 0.0
    %191 = vmatprep.subr.mxu0 0.0
    %192 = vmatpush1.msra.mxu0 0.0
    %193 = vmatprep.subr.mxu0 0.0
    %194 = vmatpush1.msra.mxu0 0.0
    %195 = vmatprep.subr.mxu0 0.0
    %196 = vmatpush1.msra.mxu0 0.0
    %197 = vmatprep.subr.mxu0 0.0
    %198 = vmatpush1.msra.mxu0 0.0
    %199 = vmatprep.subr.mxu0 0.0
    %200 = vmatpush1.msra.mxu0 0.0
    %201 = vmatprep.subr.mxu0 0.0
    %202 = vmatpush1.msra.mxu0 0.0
    %203 = vmatprep.subr.mxu0 0.0
    %204 = vmatpush1.msra.mxu0 0.0
    %205 = vmatprep.mubr.f32.mxu0 0.0
    %206 = vmatmul.mubr.f32.gmra.mrb[0].mxu0 %v118
    %v207 = vpop.f32.mrb[0].mxu0
    %v208 = vadd.f32 %v104, %v207
    %v209 = vpop.f32.mrb[0].mxu0
    %v210 = vadd.f32 %v108, %v209
    %211 = vmatprep.mubr.f32.mxu0 0.0
    %212 = vmatmul.mubr.f32.gmra.mrb[0].mxu0 %v121
    %v213 = vpop.f32.mrb[0].mxu0
    %v214 = vadd.f32 %v104, %v213
    %v215 = vpop.f32.mrb[0].mxu0
    %v216 = vadd.f32 %v108, %v215
    %217 = vmatprep.mubr.f32.mxu0 0.0
    %218 = vmatmul.mubr.f32.gmra.mrb[0].mxu0 %v124
    %v219 = vpop.f32.mrb[0].mxu0
    %v220 = vadd.f32 %v104, %v219
    %v221 = vpop.f32.mrb[0].mxu0
    %v222 = vadd.f32 %v108, %v221
    %223 = vmatprep.mubr.f32.mxu0 0.0
    %224 = vmatmul.mubr.f32.gmra.mrb[0].mxu0 %v127
    %v225 = vpop.f32.mrb[0].mxu0
    %v226 = vadd.f32 %v104, %v225
    %v227 = vpop.f32.mrb[0].mxu0
    %v228 = vadd.f32 %v108, %v227
    %229 = vmatprep.mubr.f32.mxu0 0.0
    %230 = vmatmul.mubr.f32.gmra.mrb[0].mxu0 %v130
    %v231 = vpop.f32.mrb[0].mxu0
    %v232 = vadd.f32 %v104, %v231
    %v233 = vpop.f32.mrb[0].mxu0
    %v234 = vadd.f32 %v108, %v233
    %235 = vmatprep.mubr.f32.mxu0 0.0
    %236 = vmatmul.mubr.f32.gmra.mrb[0].mxu0 %v133
    %v237 = vpop.f32.mrb[0].mxu0
    %v238 = vadd.f32 %v104, %v237
    %v239 = vpop.f32.mrb[0].mxu0
    %v240 = vadd.f32 %v108, %v239
    %241 = vmatprep.mubr.f32.mxu0 0.0
    %242 = vmatmul.mubr.f32.gmra.mrb[0].mxu0 %v136
    %v243 = vpop.f32.mrb[0].mxu0
    %v244 = vadd.f32 %v104, %v243
    %v245 = vpop.f32.mrb[0].mxu0
    %v246 = vadd.f32 %v108, %v245
    %247 = vmatprep.mubr.f32.mxu0 0.0
    %248 = vmatmul.mubr.f32.gmra.mrb[0].mxu0 %v139
    %v249 = vpop.f32.mrb[0].mxu0
    %v250 = vadd.f32 %v104, %v249
    %v251 = vpop.f32.mrb[0].mxu0
    %v252 = vadd.f32 %v108, %v251
    %253 = vdwg.mxu0
    %254 = vmatprep.subr.mxu0 0.0
    %255 = vmatpush1.msra.mxu0 %v77
    %256 = vmatprep.subr.mxu0 0.0
    %257 = vmatpush1.msra.mxu0 %v80
    %258 = vmatprep.subr.mxu0 0.0
    %259 = vmatpush1.msra.mxu0 %v83
    %260 = vmatprep.subr.mxu0 0.0
    %261 = vmatpush1.msra.mxu0 %v86
    %262 = vmatprep.subr.mxu0 0.0
    %263 = vmatpush1.msra.mxu0 %v89
    %264 = vmatprep.subr.mxu0 0.0
    %265 = vmatpush1.msra.mxu0 %v92
    %266 = vmatprep.subr.mxu0 0.0
    %267 = vmatpush1.msra.mxu0 %v95
    %268 = vmatprep.subr.mxu0 0.0
    %269 = vmatpush1.msra.mxu0 %v98
    %270 = vmatprep.subr.mxu0 0.0
    %271 = vmatpush1.msra.mxu0 0.0
    %272 = vmatprep.subr.mxu0 0.0
    %273 = vmatpush1.msra.mxu0 0.0
    %274 = vmatprep.subr.mxu0 0.0
    %275 = vmatpush1.msra.mxu0 0.0
    %276 = vmatprep.subr.mxu0 0.0
    %277 = vmatpush1.msra.mxu0 0.0
    %278 = vmatprep.subr.mxu0 0.0
    %279 = vmatpush1.msra.mxu0 0.0
    %280 = vmatprep.subr.mxu0 0.0
    %281 = vmatpush1.msra.mxu0 0.0
    %282 = vmatprep.subr.mxu0 0.0
    %283 = vmatpush1.msra.mxu0 0.0
    %284 = vmatprep.subr.mxu0 0.0
    %285 = vmatpush1.msra.mxu0 0.0
    %286 = vmatprep.subr.mxu0 0.0
    %287 = vmatpush1.msra.mxu0 0.0
    %288 = vmatprep.subr.mxu0 0.0
    %289 = vmatpush1.msra.mxu0 0.0
    %290 = vmatprep.subr.mxu0 0.0
    %291 = vmatpush1.msra.mxu0 0.0
    %292 = vmatprep.subr.mxu0 0.0
    %293 = vmatpush1.msra.mxu0 0.0
    %294 = vmatprep.subr.mxu0 0.0
    %295 = vmatpush1.msra.mxu0 0.0
    %296 = vmatprep.subr.mxu0 0.0
    %297 = vmatpush1.msra.mxu0 0.0
    %298 = vmatprep.subr.mxu0 0.0
    %299 = vmatpush1.msra.mxu0 0.0
    %300 = vmatprep.subr.mxu0 0.0
    %301 = vmatpush1.msra.mxu0 0.0
    %302 = vmatprep.subr.mxu0 0.0
    %303 = vmatpush1.msra.mxu0 0.0
    %304 = vmatprep.subr.mxu0 0.0
    %305 = vmatpush1.msra.mxu0 0.0
    %306 = vmatprep.subr.mxu0 0.0
    %307 = vmatpush1.msra.mxu0 0.0
    %308 = vmatprep.subr.mxu0 0.0
    %309 = vmatpush1.msra.mxu0 0.0
    %310 = vmatprep.subr.mxu0 0.0
    %311 = vmatpush1.msra.mxu0 0.0
    %312 = vmatprep.subr.mxu0 0.0
    %313 = vmatpush1.msra.mxu0 0.0
    %314 = vmatprep.subr.mxu0 0.0
    %315 = vmatpush1.msra.mxu0 0.0
    %316 = vmatprep.subr.mxu0 0.0
    %317 = vmatpush1.msra.mxu0 0.0
    %318 = vmatprep.mubr.f32.mxu0 0.0
    %319 = vmatmul.mubr.f32.gmra.mrb[0].mxu0 %v118
    %v320 = vpop.f32.mrb[0].mxu0
    %v321 = vadd.f32 %v112, %v320
    %v322 = vpop.f32.mrb[0].mxu0
    %323 = vmatprep.mubr.f32.mxu0 0.0
    %324 = vmatmul.mubr.f32.gmra.mrb[0].mxu0 %v121
    %v325 = vpop.f32.mrb[0].mxu0
    %v326 = vadd.f32 %v112, %v325
    %v327 = vpop.f32.mrb[0].mxu0
    %328 = vmatprep.mubr.f32.mxu0 0.0
    %329 = vmatmul.mubr.f32.gmra.mrb[0].mxu0 %v124
    %v330 = vpop.f32.mrb[0].mxu0
    %v331 = vadd.f32 %v112, %v330
    %v332 = vpop.f32.mrb[0].mxu0
    %333 = vmatprep.mubr.f32.mxu0 0.0
    %334 = vmatmul.mubr.f32.gmra.mrb[0].mxu0 %v127
    %v335 = vpop.f32.mrb[0].mxu0
    %v336 = vadd.f32 %v112, %v335
    %v337 = vpop.f32.mrb[0].mxu0
    %338 = vmatprep.mubr.f32.mxu0 0.0
    %339 = vmatmul.mubr.f32.gmra.mrb[0].mxu0 %v130
    %v340 = vpop.f32.mrb[0].mxu0
    %v341 = vadd.f32 %v112, %v340
    %v342 = vpop.f32.mrb[0].mxu0
    %343 = vmatprep.mubr.f32.mxu0 0.0
    %344 = vmatmul.mubr.f32.gmra.mrb[0].mxu0 %v133
    %v345 = vpop.f32.mrb[0].mxu0
    %v346 = vadd.f32 %v112, %v345
    %v347 = vpop.f32.mrb[0].mxu0
    %348 = vmatprep.mubr.f32.mxu0 0.0
    %349 = vmatmul.mubr.f32.gmra.mrb[0].mxu0 %v136
    %v350 = vpop.f32.mrb[0].mxu0
    %v351 = vadd.f32 %v112, %v350
    %v352 = vpop.f32.mrb[0].mxu0
    %353 = vmatprep.mubr.f32.mxu0 0.0
    %354 = vmatmul.mubr.f32.gmra.mrb[0].mxu0 %v139
    %v355 = vpop.f32.mrb[0].mxu0
    %v356 = vadd.f32 %v112, %v355
    %v357 = vpop.f32.mrb[0].mxu0
    %358 = vdwg.mxu0
    %359 = vst [vmem:[#allocation2] sm:$0xff] %v208
    %360 = vst [vmem:[#allocation2 + $0x8] sm:$0xff] %v210
    %361 = vst [vmem:[#allocation2 + $0x10] sm:$0xff] %v321
    %362 = vst [vmem:[#allocation2 + $0x18] sm:$0xff] %v214
    %363 = vst [vmem:[#allocation2 + $0x20] sm:$0xff] %v216
    %364 = vst [vmem:[#allocation2 + $0x28] sm:$0xff] %v326
    %365 = vst [vmem:[#allocation2 + $0x30] sm:$0xff] %v220
    %366 = vst [vmem:[#allocation2 + $0x38] sm:$0xff] %v222
    %367 = vst [vmem:[#allocation2 + $0x40] sm:$0xff] %v331
    %368 = vst [vmem:[#allocation2 + $0x48] sm:$0xff] %v226
    %369 = vst [vmem:[#allocation2 + $0x50] sm:$0xff] %v228
    %370 = vst [vmem:[#allocation2 + $0x58] sm:$0xff] %v336
    %371 = vst [vmem:[#allocation2 + $0x60] sm:$0xff] %v232
    %372 = vst [vmem:[#allocation2 + $0x68] sm:$0xff] %v234
    %373 = vst [vmem:[#allocation2 + $0x70] sm:$0xff] %v341
    %374 = vst [vmem:[#allocation2 + $0x78] sm:$0xff] %v238
    %375 = vst [vmem:[#allocation2 + $0x80] sm:$0xff] %v240
    %376 = vst [vmem:[#allocation2 + $0x88] sm:$0xff] %v346
    %377 = vst [vmem:[#allocation2 + $0x90] sm:$0xff] %v244
    %378 = vst [vmem:[#allocation2 + $0x98] sm:$0xff] %v246
    %379 = vst [vmem:[#allocation2 + $0xa0] sm:$0xff] %v351
    %380 = vst [vmem:[#allocation2 + $0xa8] sm:$0xff] %v250
    %381 = vst [vmem:[#allocation2 + $0xb0] sm:$0xff] %v252
    %382 = vst [vmem:[#allocation2 + $0xb8] sm:$0xff] %v356
    %v383 = vld [vmem:[#allocation9] sm:$0xff]
    %v384 = vld [vmem:[#allocation9 + $0x8] sm:$0xff]
    %v385 = vld [vmem:[#allocation9 + $0x10] sm:$0xff]
    %v386 = vld [vmem:[#allocation9 + $0x18] sm:$0xff]
    %v387 = vld [vmem:[#allocation9 + $0x20] sm:$0xff]
    %v388 = vld [vmem:[#allocation9 + $0x28] sm:$0xff]
    %v389 = vld [vmem:[#allocation9 + $0x30] sm:$0xff]
    %v390 = vld [vmem:[#allocation9 + $0x38] sm:$0xff]
    %v391 = vld [vmem:[#allocation9 + $0x40] sm:$0xff]
    %v392 = vld [vmem:[#allocation9 + $0x48] sm:$0xff]
    %v393 = vld [vmem:[#allocation9 + $0x50] sm:$0xff]
    %v394 = vld [vmem:[#allocation9 + $0x58] sm:$0xff]
    %v395 = vld [vmem:[#allocation9 + $0x60] sm:$0xff]
    %v396 = vld [vmem:[#allocation9 + $0x68] sm:$0xff]
    %v397 = vld [vmem:[#allocation9 + $0x70] sm:$0xff]
    %v398 = vld [vmem:[#allocation9 + $0x78] sm:$0xff]
    %v399 = vld [vmem:[#allocation9 + $0x80] sm:$0xff]
    %v400 = vld [vmem:[#allocation9 + $0x88] sm:$0xff]
    %v401 = vld [vmem:[#allocation9 + $0x90] sm:$0xff]
    %v402 = vld [vmem:[#allocation9 + $0x98] sm:$0xff]
    %v403 = vld [vmem:[#allocation9 + $0xa0] sm:$0xff]
    %v404 = vld [vmem:[#allocation9 + $0xa8] sm:$0xff]
    %v405 = vld [vmem:[#allocation9 + $0xb0] sm:$0xff]
    %v406 = vld [vmem:[#allocation9 + $0xb8] sm:$0xff]
    %v407 = vld [vmem:[#allocation9 + $0xc0] sm:$0xff]
    %v408 = vld [vmem:[#allocation9 + $0xc8] sm:$0xff]
    %v409 = vld [vmem:[#allocation9 + $0xd0] sm:$0xff]
    %v410 = vld [vmem:[#allocation9 + $0xd8] sm:$0xff]
    %v411 = vld [vmem:[#allocation9 + $0xe0] sm:$0xff]
    %v412 = vld [vmem:[#allocation9 + $0xe8] sm:$0xff]
    %v413 = vld [vmem:[#allocation9 + $0xf0] sm:$0xff]
    %v414 = vld [vmem:[#allocation9 + $0xf8] sm:$0xff]
    %v415 = vld [vmem:[#allocation9 + $0x100] sm:$0xff]
    %v416 = vld [vmem:[#allocation9 + $0x108] sm:$0xff]
    %v417 = vld [vmem:[#allocation9 + $0x110] sm:$0xff]
    %v418 = vld [vmem:[#allocation9 + $0x118] sm:$0xff]
    %v419 = vld [vmem:[#allocation9 + $0x120] sm:$0xff]
    %v420 = vld [vmem:[#allocation9 + $0x128] sm:$0xff]
    %v421 = vld [vmem:[#allocation9 + $0x130] sm:$0xff]
    %v422 = vld [vmem:[#allocation9 + $0x138] sm:$0xff]
    %v423 = vld [vmem:[#allocation9 + $0x140] sm:$0xff]
    %v424 = vld [vmem:[#allocation9 + $0x148] sm:$0xff]
    %v425 = vld [vmem:[#allocation9 + $0x150] sm:$0xff]
    %v426 = vld [vmem:[#allocation9 + $0x158] sm:$0xff]
    %v427 = vld [vmem:[#allocation9 + $0x160] sm:$0xff]
    %v428 = vld [vmem:[#allocation9 + $0x168] sm:$0xff]
    %v429 = vld [vmem:[#allocation9 + $0x170] sm:$0xff]
    %v430 = vld [vmem:[#allocation9 + $0x178] sm:$0xff]
    %v431 = vld [vmem:[%s4] sm:$0x1]
    %v433 = vlaneseq
    %v434 = vshrl.u32 %v433, 7
    %v435 = vsub.s32 0, %v434
    %v436 = vrot.slane %v431, %v435
    %v438 = vld [vmem:[#allocation3] sm:$0xff]
    %s439 = smul.u32 0, 3
    %s440 = smul.addr %s439, 8
    %s441 = scalar_lea.vmem [#allocation2], %s440
    %v442 = vld [vmem:[%s441] sm:$0xff]
    %v443 = vld [vmem:[%s441 + $0x8] sm:$0xff]
    %v444 = vld [vmem:[%s441 + $0x10] sm:$0xff]
    %445 = vmatprep.subr.mxu0 %v384
    %446 = vmatpush1.msra.mxu0 %v383
    %447 = vmatprep.subr.mxu0 %v387
    %448 = vmatpush1.msra.mxu0 %v386
    %449 = vmatprep.subr.mxu0 %v390
    %450 = vmatpush1.msra.mxu0 %v389
    %451 = vmatprep.subr.mxu0 %v393
    %452 = vmatpush1.msra.mxu0 %v392
    %453 = vmatprep.subr.mxu0 %v396
    %454 = vmatpush1.msra.mxu0 %v395
    %455 = vmatprep.subr.mxu0 %v399
    %456 = vmatpush1.msra.mxu0 %v398
    %457 = vmatprep.subr.mxu0 %v402
    %458 = vmatpush1.msra.mxu0 %v401
    %459 = vmatprep.subr.mxu0 %v405
    %460 = vmatpush1.msra.mxu0 %v404
    %461 = vmatprep.subr.mxu0 %v408
    %462 = vmatpush1.msra.mxu0 %v407
    %463 = vmatprep.subr.mxu0 %v411
    %464 = vmatpush1.msra.mxu0 %v410
    %465 = vmatprep.subr.mxu0 %v414
    %466 = vmatpush1.msra.mxu0 %v413
    %467 = vmatprep.subr.mxu0 %v417
    %468 = vmatpush1.msra.mxu0 %v416
    %469 = vmatprep.subr.mxu0 %v420
    %470 = vmatpush1.msra.mxu0 %v419
    %471 = vmatprep.subr.mxu0 %v423
    %472 = vmatpush1.msra.mxu0 %v422
    %473 = vmatprep.subr.mxu0 %v426
    %474 = vmatpush1.msra.mxu0 %v425
    %475 = vmatprep.subr.mxu0 %v429
    %476 = vmatpush1.msra.mxu0 %v428
    %477 = vmatprep.subr.mxu0 0.0
    %478 = vmatpush1.msra.mxu0 0.0
    %479 = vmatprep.subr.mxu0 0.0
    %480 = vmatpush1.msra.mxu0 0.0
    %481 = vmatprep.subr.mxu0 0.0
    %482 = vmatpush1.msra.mxu0 0.0
    %483 = vmatprep.subr.mxu0 0.0
    %484 = vmatpush1.msra.mxu0 0.0
    %485 = vmatprep.subr.mxu0 0.0
    %486 = vmatpush1.msra.mxu0 0.0
    %487 = vmatprep.subr.mxu0 0.0
    %488 = vmatpush1.msra.mxu0 0.0
    %489 = vmatprep.subr.mxu0 0.0
    %490 = vmatpush1.msra.mxu0 0.0
    %491 = vmatprep.subr.mxu0 0.0
    %492 = vmatpush1.msra.mxu0 0.0
    %493 = vmatprep.subr.mxu0 0.0
    %494 = vmatpush1.msra.mxu0 0.0
    %495 = vmatprep.subr.mxu0 0.0
    %496 = vmatpush1.msra.mxu0 0.0
    %497 = vmatprep.subr.mxu0 0.0
    %498 = vmatpush1.msra.mxu0 0.0
    %499 = vmatprep.subr.mxu0 0.0
    %500 = vmatpush1.msra.mxu0 0.0
    %501 = vmatprep.subr.mxu0 0.0
    %502 = vmatpush1.msra.mxu0 0.0
    %503 = vmatprep.subr.mxu0 0.0
    %504 = vmatpush1.msra.mxu0 0.0
    %505 = vmatprep.subr.mxu0 0.0
    %506 = vmatpush1.msra.mxu0 0.0
    %507 = vmatprep.subr.mxu0 0.0
    %508 = vmatpush1.msra.mxu0 0.0
    %509 = vmatprep.mubr.f32.mxu0 0.0
    %510 = vmatmul.mubr.f32.gmra.mrb[0].mxu0 %v438
    %v511 = vpop.f32.mrb[0].mxu0
    %v512 = vadd.f32 0.0, %v511
    %v513 = vpop.f32.mrb[0].mxu0
    %v514 = vadd.f32 0.0, %v513
    %515 = vdwg.mxu0
    %516 = vmatprep.subr.mxu0 0.0
    %517 = vmatpush1.msra.mxu0 %v385
    %518 = vmatprep.subr.mxu0 0.0
    %519 = vmatpush1.msra.mxu0 %v388
    %520 = vmatprep.subr.mxu0 0.0
    %521 = vmatpush1.msra.mxu0 %v391
    %522 = vmatprep.subr.mxu0 0.0
    %523 = vmatpush1.msra.mxu0 %v394
    %524 = vmatprep.subr.mxu0 0.0
    %525 = vmatpush1.msra.mxu0 %v397
    %526 = vmatprep.subr.mxu0 0.0
    %527 = vmatpush1.msra.mxu0 %v400
    %528 = vmatprep.subr.mxu0 0.0
    %529 = vmatpush1.msra.mxu0 %v403
    %530 = vmatprep.subr.mxu0 0.0
    %531 = vmatpush1.msra.mxu0 %v406
    %532 = vmatprep.subr.mxu0 0.0
    %533 = vmatpush1.msra.mxu0 %v409
    %534 = vmatprep.subr.mxu0 0.0
    %535 = vmatpush1.msra.mxu0 %v412
    %536 = vmatprep.subr.mxu0 0.0
    %537 = vmatpush1.msra.mxu0 %v415
    %538 = vmatprep.subr.mxu0 0.0
    %539 = vmatpush1.msra.mxu0 %v418
    %540 = vmatprep.subr.mxu0 0.0
    %541 = vmatpush1.msra.mxu0 %v421
    %542 = vmatprep.subr.mxu0 0.0
    %543 = vmatpush1.msra.mxu0 %v424
    %544 = vmatprep.subr.mxu0 0.0
    %545 = vmatpush1.msra.mxu0 %v427
    %546 = vmatprep.subr.mxu0 0.0
    %547 = vmatpush1.msra.mxu0 %v430
    %548 = vmatprep.subr.mxu0 0.0
    %549 = vmatpush1.msra.mxu0 0.0
    %550 = vmatprep.subr.mxu0 0.0
    %551 = vmatpush1.msra.mxu0 0.0
    %552 = vmatprep.subr.mxu0 0.0
    %553 = vmatpush1.msra.mxu0 0.0
    %554 = vmatprep.subr.mxu0 0.0
    %555 = vmatpush1.msra.mxu0 0.0
    %556 = vmatprep.subr.mxu0 0.0
    %557 = vmatpush1.msra.mxu0 0.0
    %558 = vmatprep.subr.mxu0 0.0
    %559 = vmatpush1.msra.mxu0 0.0
    %560 = vmatprep.subr.mxu0 0.0
    %561 = vmatpush1.msra.mxu0 0.0
    %562 = vmatprep.subr.mxu0 0.0
    %563 = vmatpush1.msra.mxu0 0.0
    %564 = vmatprep.subr.mxu0 0.0
    %565 = vmatpush1.msra.mxu0 0.0
    %566 = vmatprep.subr.mxu0 0.0
    %567 = vmatpush1.msra.mxu0 0.0
    %568 = vmatprep.subr.mxu0 0.0
    %569 = vmatpush1.msra.mxu0 0.0
    %570 = vmatprep.subr.mxu0 0.0
    %571 = vmatpush1.msra.mxu0 0.0
    %572 = vmatprep.subr.mxu0 0.0
    %573 = vmatpush1.msra.mxu0 0.0
    %574 = vmatprep.subr.mxu0 0.0
    %575 = vmatpush1.msra.mxu0 0.0
    %576 = vmatprep.subr.mxu0 0.0
    %577 = vmatpush1.msra.mxu0 0.0
    %578 = vmatprep.subr.mxu0 0.0
    %579 = vmatpush1.msra.mxu0 0.0
    %580 = vmatprep.mubr.f32.mxu0 0.0
    %581 = vmatmul.mubr.f32.gmra.mrb[0].mxu0 %v438
    %v582 = vpop.f32.mrb[0].mxu0
    %v583 = vadd.f32 0.0, %v582
    %v584 = vpop.f32.mrb[0].mxu0
    %585 = vdwg.mxu0
    %v586 = vadd.f32 %v442, %v512
    %v587 = vxor.u32 %v586, 2147483648
    %v588 = vmul.f32 %v587, 1.442695
    %v589 = vpow.pop %v588
    %v590 = vadd.f32 %v589, 1.0
    %v591 = vrcp.pop %v590
    %v592 = vmul.f32 1.0, %v591
    %v593 = vadd.f32 %v443, %v514
    %v594 = vxor.u32 %v593, 2147483648
    %v595 = vmul.f32 %v594, 1.442695
    %v596 = vpow.pop %v595
    %v597 = vadd.f32 %v596, 1.0
    %v598 = vrcp.pop %v597
    %v599 = vmul.f32 1.0, %v598
    %v600 = vadd.f32 %v583, %v436
    %v601 = vmul.f32 %v592, %v600
    %v602 = vadd.f32 %v444, %v601
    %v603 = vtanh.pop %v602
    %v604 = vsub.f32 %v438, %v603
    %v605 = vmul.f32 %v599, %v604
    %v606 = vadd.f32 %v603, %v605
    %607 = vst [vmem:[#allocation10] sm:$0xff] %v606
    %s608 = smul.u32 1, 3
    %s609 = smul.addr %s608, 8
    %s610 = scalar_lea.vmem [#allocation2], %s609
    %v611 = vld [vmem:[%s610] sm:$0xff]
    %v612 = vld [vmem:[%s610 + $0x8] sm:$0xff]
    %v613 = vld [vmem:[%s610 + $0x10] sm:$0xff]
    %614 = vmatprep.subr.mxu0 %v384
    %615 = vmatpush1.msra.mxu0 %v383
    %616 = vmatprep.subr.mxu0 %v387
    %617 = vmatpush1.msra.mxu0 %v386
    %618 = vmatprep.subr.mxu0 %v390
    %619 = vmatpush1.msra.mxu0 %v389
    %620 = vmatprep.subr.mxu0 %v393
    %621 = vmatpush1.msra.mxu0 %v392
    %622 = vmatprep.subr.mxu0 %v396
    %623 = vmatpush1.msra.mxu0 %v395
    %624 = vmatprep.subr.mxu0 %v399
    %625 = vmatpush1.msra.mxu0 %v398
    %626 = vmatprep.subr.mxu0 %v402
    %627 = vmatpush1.msra.mxu0 %v401
    %628 = vmatprep.subr.mxu0 %v405
    %629 = vmatpush1.msra.mxu0 %v404
    %630 = vmatprep.subr.mxu0 %v408
    %631 = vmatpush1.msra.mxu0 %v407
    %632 = vmatprep.subr.mxu0 %v411
    %633 = vmatpush1.msra.mxu0 %v410
    %634 = vmatprep.subr.mxu0 %v414
    %635 = vmatpush1.msra.mxu0 %v413
    %636 = vmatprep.subr.mxu0 %v417
    %637 = vmatpush1.msra.mxu0 %v416
    %638 = vmatprep.subr.mxu0 %v420
    %639 = vmatpush1.msra.mxu0 %v419
    %640 = vmatprep.subr.mxu0 %v423
    %641 = vmatpush1.msra.mxu0 %v422
    %642 = vmatprep.subr.mxu0 %v426
    %643 = vmatpush1.msra.mxu0 %v425
    %644 = vmatprep.subr.mxu0 %v429
    %645 = vmatpush1.msra.mxu0 %v428
    %646 = vmatprep.subr.mxu0 0.0
    %647 = vmatpush1.msra.mxu0 0.0
    %648 = vmatprep.subr.mxu0 0.0
    %649 = vmatpush1.msra.mxu0 0.0
    %650 = vmatprep.subr.mxu0 0.0
    %651 = vmatpush1.msra.mxu0 0.0
    %652 = vmatprep.subr.mxu0 0.0
    %653 = vmatpush1.msra.mxu0 0.0
    %654 = vmatprep.subr.mxu0 0.0
    %655 = vmatpush1.msra.mxu0 0.0
    %656 = vmatprep.subr.mxu0 0.0
    %657 = vmatpush1.msra.mxu0 0.0
    %658 = vmatprep.subr.mxu0 0.0
    %659 = vmatpush1.msra.mxu0 0.0
    %660 = vmatprep.subr.mxu0 0.0
    %661 = vmatpush1.msra.mxu0 0.0
    %662 = vmatprep.subr.mxu0 0.0
    %663 = vmatpush1.msra.mxu0 0.0
    %664 = vmatprep.subr.mxu0 0.0
    %665 = vmatpush1.msra.mxu0 0.0
    %666 = vmatprep.subr.mxu0 0.0
    %667 = vmatpush1.msra.mxu0 0.0
    %668 = vmatprep.subr.mxu0 0.0
    %669 = vmatpush1.msra.mxu0 0.0
    %670 = vmatprep.subr.mxu0 0.0
    %671 = vmatpush1.msra.mxu0 0.0
    %672 = vmatprep.subr.mxu0 0.0
    %673 = vmatpush1.msra.mxu0 0.0
    %674 = vmatprep.subr.mxu0 0.0
    %675 = vmatpush1.msra.mxu0 0.0
    %676 = vmatprep.subr.mxu0 0.0
    %677 = vmatpush1.msra.mxu0 0.0
    %678 = vmatprep.mubr.f32.mxu0 0.0
    %679 = vmatmul.mubr.f32.gmra.mrb[0].mxu0 %v606
    %v680 = vpop.f32.mrb[0].mxu0
    %v681 = vadd.f32 0.0, %v680
    %v682 = vpop.f32.mrb[0].mxu0
    %v683 = vadd.f32 0.0, %v682
    %684 = vdwg.mxu0
    %685 = vmatprep.subr.mxu0 0.0
    %686 = vmatpush1.msra.mxu0 %v385
    %687 = vmatprep.subr.mxu0 0.0
    %688 = vmatpush1.msra.mxu0 %v388
    %689 = vmatprep.subr.mxu0 0.0
    %690 = vmatpush1.msra.mxu0 %v391
    %691 = vmatprep.subr.mxu0 0.0
    %692 = vmatpush1.msra.mxu0 %v394
    %693 = vmatprep.subr.mxu0 0.0
    %694 = vmatpush1.msra.mxu0 %v397
    %695 = vmatprep.subr.mxu0 0.0
    %696 = vmatpush1.msra.mxu0 %v400
    %697 = vmatprep.subr.mxu0 0.0
    %698 = vmatpush1.msra.mxu0 %v403
    %699 = vmatprep.subr.mxu0 0.0
    %700 = vmatpush1.msra.mxu0 %v406
    %701 = vmatprep.subr.mxu0 0.0
    %702 = vmatpush1.msra.mxu0 %v409
    %703 = vmatprep.subr.mxu0 0.0
    %704 = vmatpush1.msra.mxu0 %v412
    %705 = vmatprep.subr.mxu0 0.0
    %706 = vmatpush1.msra.mxu0 %v415
    %707 = vmatprep.subr.mxu0 0.0
    %708 = vmatpush1.msra.mxu0 %v418
    %709 = vmatprep.subr.mxu0 0.0
    %710 = vmatpush1.msra.mxu0 %v421
    %711 = vmatprep.subr.mxu0 0.0
    %712 = vmatpush1.msra.mxu0 %v424
    %713 = vmatprep.subr.mxu0 0.0
    %714 = vmatpush1.msra.mxu0 %v427
    %715 = vmatprep.subr.mxu0 0.0
    %716 = vmatpush1.msra.mxu0 %v430
    %717 = vmatprep.subr.mxu0 0.0
    %718 = vmatpush1.msra.mxu0 0.0
    %719 = vmatprep.subr.mxu0 0.0
    %720 = vmatpush1.msra.mxu0 0.0
    %721 = vmatprep.subr.mxu0 0.0
    %722 = vmatpush1.msra.mxu0 0.0
    %723 = vmatprep.subr.mxu0 0.0
    %724 = vmatpush1.msra.mxu0 0.0
    %725 = vmatprep.subr.mxu0 0.0
    %726 = vmatpush1.msra.mxu0 0.0
    %727 = vmatprep.subr.mxu0 0.0
    %728 = vmatpush1.msra.mxu0 0.0
    %729 = vmatprep.subr.mxu0 0.0
    %730 = vmatpush1.msra.mxu0 0.0
    %731 = vmatprep.subr.mxu0 0.0
    %732 = vmatpush1.msra.mxu0 0.0
    %733 = vmatprep.subr.mxu0 0.0
    %734 = vmatpush1.msra.mxu0 0.0
    %735 = vmatprep.subr.mxu0 0.0
    %736 = vmatpush1.msra.mxu0 0.0
    %737 = vmatprep.subr.mxu0 0.0
    %738 = vmatpush1.msra.mxu0 0.0
    %739 = vmatprep.subr.mxu0 0.0
    %740 = vmatpush1.msra.mxu0 0.0
    %741 = vmatprep.subr.mxu0 0.0
    %742 = vmatpush1.msra.mxu0 0.0
    %743 = vmatprep.subr.mxu0 0.0
    %744 = vmatpush1.msra.mxu0 0.0
    %745 = vmatprep.subr.mxu0 0.0
    %746 = vmatpush1.msra.mxu0 0.0
    %747 = vmatprep.subr.mxu0 0.0
    %748 = vmatpush1.msra.mxu0 0.0
    %749 = vmatprep.mubr.f32.mxu0 0.0
    %750 = vmatmul.mubr.f32.gmra.mrb[0].mxu0 %v606
    %v751 = vpop.f32.mrb[0].mxu0
    %v752 = vadd.f32 0.0, %v751
    %v753 = vpop.f32.mrb[0].mxu0
    %754 = vdwg.mxu0
    %v755 = vadd.f32 %v611, %v681
    %v756 = vxor.u32 %v755, 2147483648
    %v757 = vmul.f32 %v756, 1.442695
    %v758 = vpow.pop %v757
    %v759 = vadd.f32 %v758, 1.0
    %v760 = vrcp.pop %v759
    %v761 = vmul.f32 1.0, %v760
    %v762 = vadd.f32 %v612, %v683
    %v763 = vxor.u32 %v762, 2147483648
    %v764 = vmul.f32 %v763, 1.442695
    %v765 = vpow.pop %v764
    %v766 = vadd.f32 %v765, 1.0
    %v767 = vrcp.pop %v766
    %v768 = vmul.f32 1.0, %v767
    %v769 = vadd.f32 %v752, %v436
    %v770 = vmul.f32 %v761, %v769
    %v771 = vadd.f32 %v613, %v770
    %v772 = vtanh.pop %v771
    %v773 = vsub.f32 %v606, %v772
    %v774 = vmul.f32 %v768, %v773
    %v775 = vadd.f32 %v772, %v774
    %s776 = scalar_lea.vmem [#allocation10], 8
    %777 = vst [vmem:[%s776] sm:$0xff] %v775
    %s778 = smul.u32 2, 3
    %s779 = smul.addr %s778, 8
    %s780 = scalar_lea.vmem [#allocation2], %s779
    %v781 = vld [vmem:[%s780] sm:$0xff]
    %v782 = vld [vmem:[%s780 + $0x8] sm:$0xff]
    %v783 = vld [vmem:[%s780 + $0x10] sm:$0xff]
    %784 = vmatprep.subr.mxu0 %v384
    %785 = vmatpush1.msra.mxu0 %v383
    %786 = vmatprep.subr.mxu0 %v387
    %787 = vmatpush1.msra.mxu0 %v386
    %788 = vmatprep.subr.mxu0 %v390
    %789 = vmatpush1.msra.mxu0 %v389
    %790 = vmatprep.subr.mxu0 %v393
    %791 = vmatpush1.msra.mxu0 %v392
    %792 = vmatprep.subr.mxu0 %v396
    %793 = vmatpush1.msra.mxu0 %v395
    %794 = vmatprep.subr.mxu0 %v399
    %795 = vmatpush1.msra.mxu0 %v398
    %796 = vmatprep.subr.mxu0 %v402
    %797 = vmatpush1.msra.mxu0 %v401
    %798 = vmatprep.subr.mxu0 %v405
    %799 = vmatpush1.msra.mxu0 %v404
    %800 = vmatprep.subr.mxu0 %v408
    %801 = vmatpush1.msra.mxu0 %v407
    %802 = vmatprep.subr.mxu0 %v411
    %803 = vmatpush1.msra.mxu0 %v410
    %804 = vmatprep.subr.mxu0 %v414
    %805 = vmatpush1.msra.mxu0 %v413
    %806 = vmatprep.subr.mxu0 %v417
    %807 = vmatpush1.msra.mxu0 %v416
    %808 = vmatprep.subr.mxu0 %v420
    %809 = vmatpush1.msra.mxu0 %v419
    %810 = vmatprep.subr.mxu0 %v423
    %811 = vmatpush1.msra.mxu0 %v422
    %812 = vmatprep.subr.mxu0 %v426
    %813 = vmatpush1.msra.mxu0 %v425
    %814 = vmatprep.subr.mxu0 %v429
    %815 = vmatpush1.msra.mxu0 %v428
    %816 = vmatprep.subr.mxu0 0.0
    %817 = vmatpush1.msra.mxu0 0.0
    %818 = vmatprep.subr.mxu0 0.0
    %819 = vmatpush1.msra.mxu0 0.0
    %820 = vmatprep.subr.mxu0 0.0
    %821 = vmatpush1.msra.mxu0 0.0
    %822 = vmatprep.subr.mxu0 0.0
    %823 = vmatpush1.msra.mxu0 0.0
    %824 = vmatprep.subr.mxu0 0.0
    %825 = vmatpush1.msra.mxu0 0.0
    %826 = vmatprep.subr.mxu0 0.0
    %827 = vmatpush1.msra.mxu0 0.0
    %828 = vmatprep.subr.mxu0 0.0
    %829 = vmatpush1.msra.mxu0 0.0
    %830 = vmatprep.subr.mxu0 0.0
    %831 = vmatpush1.msra.mxu0 0.0
    %832 = vmatprep.subr.mxu0 0.0
    %833 = vmatpush1.msra.mxu0 0.0
    %834 = vmatprep.subr.mxu0 0.0
    %835 = vmatpush1.msra.mxu0 0.0
    %836 = vmatprep.subr.mxu0 0.0
    %837 = vmatpush1.msra.mxu0 0.0
    %838 = vmatprep.subr.mxu0 0.0
    %839 = vmatpush1.msra.mxu0 0.0
    %840 = vmatprep.subr.mxu0 0.0
    %841 = vmatpush1.msra.mxu0 0.0
    %842 = vmatprep.subr.mxu0 0.0
    %843 = vmatpush1.msra.mxu0 0.0
    %844 = vmatprep.subr.mxu0 0.0
    %845 = vmatpush1.msra.mxu0 0.0
    %846 = vmatprep.subr.mxu0 0.0
    %847 = vmatpush1.msra.mxu0 0.0
    %848 = vmatprep.mubr.f32.mxu0 0.0
    %849 = vmatmul.mubr.f32.gmra.mrb[0].mxu0 %v775
    %v850 = vpop.f32.mrb[0].mxu0
    %v851 = vadd.f32 0.0, %v850
    %v852 = vpop.f32.mrb[0].mxu0
    %v853 = vadd.f32 0.0, %v852
    %854 = vdwg.mxu0
    %855 = vmatprep.subr.mxu0 0.0
    %856 = vmatpush1.msra.mxu0 %v385
    %857 = vmatprep.subr.mxu0 0.0
    %858 = vmatpush1.msra.mxu0 %v388
    %859 = vmatprep.subr.mxu0 0.0
    %860 = vmatpush1.msra.mxu0 %v391
    %861 = vmatprep.subr.mxu0 0.0
    %862 = vmatpush1.msra.mxu0 %v394
    %863 = vmatprep.subr.mxu0 0.0
    %864 = vmatpush1.msra.mxu0 %v397
    %865 = vmatprep.subr.mxu0 0.0
    %866 = vmatpush1.msra.mxu0 %v400
    %867 = vmatprep.subr.mxu0 0.0
    %868 = vmatpush1.msra.mxu0 %v403
    %869 = vmatprep.subr.mxu0 0.0
    %870 = vmatpush1.msra.mxu0 %v406
    %871 = vmatprep.subr.mxu0 0.0
    %872 = vmatpush1.msra.mxu0 %v409
    %873 = vmatprep.subr.mxu0 0.0
    %874 = vmatpush1.msra.mxu0 %v412
    %875 = vmatprep.subr.mxu0 0.0
    %876 = vmatpush1.msra.mxu0 %v415
    %877 = vmatprep.subr.mxu0 0.0
    %878 = vmatpush1.msra.mxu0 %v418
    %879 = vmatprep.subr.mxu0 0.0
    %880 = vmatpush1.msra.mxu0 %v421
    %881 = vmatprep.subr.mxu0 0.0
    %882 = vmatpush1.msra.mxu0 %v424
    %883 = vmatprep.subr.mxu0 0.0
    %884 = vmatpush1.msra.mxu0 %v427
    %885 = vmatprep.subr.mxu0 0.0
    %886 = vmatpush1.msra.mxu0 %v430
    %887 = vmatprep.subr.mxu0 0.0
    %888 = vmatpush1.msra.mxu0 0.0
    %889 = vmatprep.subr.mxu0 0.0
    %890 = vmatpush1.msra.mxu0 0.0
    %891 = vmatprep.subr.mxu0 0.0
    %892 = vmatpush1.msra.mxu0 0.0
    %893 = vmatprep.subr.mxu0 0.0
    %894 = vmatpush1.msra.mxu0 0.0
    %895 = vmatprep.subr.mxu0 0.0
    %896 = vmatpush1.msra.mxu0 0.0
    %897 = vmatprep.subr.mxu0 0.0
    %898 = vmatpush1.msra.mxu0 0.0
    %899 = vmatprep.subr.mxu0 0.0
    %900 = vmatpush1.msra.mxu0 0.0
    %901 = vmatprep.subr.mxu0 0.0
    %902 = vmatpush1.msra.mxu0 0.0
    %903 = vmatprep.subr.mxu0 0.0
    %904 = vmatpush1.msra.mxu0 0.0
    %905 = vmatprep.subr.mxu0 0.0
    %906 = vmatpush1.msra.mxu0 0.0
    %907 = vmatprep.subr.mxu0 0.0
    %908 = vmatpush1.msra.mxu0 0.0
    %909 = vmatprep.subr.mxu0 0.0
    %910 = vmatpush1.msra.mxu0 0.0
    %911 = vmatprep.subr.mxu0 0.0
    %912 = vmatpush1.msra.mxu0 0.0
    %913 = vmatprep.subr.mxu0 0.0
    %914 = vmatpush1.msra.mxu0 0.0
    %915 = vmatprep.subr.mxu0 0.0
    %916 = vmatpush1.msra.mxu0 0.0
    %917 = vmatprep.subr.mxu0 0.0
    %918 = vmatpush1.msra.mxu0 0.0
    %919 = vmatprep.mubr.f32.mxu0 0.0
    %920 = vmatmul.mubr.f32.gmra.mrb[0].mxu0 %v775
    %v921 = vpop.f32.mrb[0].mxu0
    %v922 = vadd.f32 0.0, %v921
    %v923 = vpop.f32.mrb[0].mxu0
    %924 = vdwg.mxu0
    %v925 = vadd.f32 %v781, %v851
    %v926 = vxor.u32 %v925, 2147483648
    %v927 = vmul.f32 %v926, 1.442695
    %v928 = vpow.pop %v927
    %v929 = vadd.f32 %v928, 1.0
    %v930 = vrcp.pop %v929
    %v931 = vmul.f32 1.0, %v930
    %v932 = vadd.f32 %v782, %v853
    %v933 = vxor.u32 %v932, 2147483648
    %v934 = vmul.f32 %v933, 1.442695
    %v935 = vpow.pop %v934
    %v936 = vadd.f32 %v935, 1.0
    %v937 = vrcp.pop %v936
    %v938 = vmul.f32 1.0, %v937
    %v939 = vadd.f32 %v922, %v436
    %v940 = vmul.f32 %v931, %v939
    %v941 = vadd.f32 %v783, %v940
    %v942 = vtanh.pop %v941
    %v943 = vsub.f32 %v775, %v942
    %v944 = vmul.f32 %v938, %v943
    %v945 = vadd.f32 %v942, %v944
    %s946 = scalar_lea.vmem [#allocation10], 16
    %947 = vst [vmem:[%s946] sm:$0xff] %v945
    %s948 = smul.u32 3, 3
    %s949 = smul.addr %s948, 8
    %s950 = scalar_lea.vmem [#allocation2], %s949
    %v951 = vld [vmem:[%s950] sm:$0xff]
    %v952 = vld [vmem:[%s950 + $0x8] sm:$0xff]
    %v953 = vld [vmem:[%s950 + $0x10] sm:$0xff]
    %954 = vmatprep.subr.mxu0 %v384
    %955 = vmatpush1.msra.mxu0 %v383
    %956 = vmatprep.subr.mxu0 %v387
    %957 = vmatpush1.msra.mxu0 %v386
    %958 = vmatprep.subr.mxu0 %v390
    %959 = vmatpush1.msra.mxu0 %v389
    %960 = vmatprep.subr.mxu0 %v393
    %961 = vmatpush1.msra.mxu0 %v392
    %962 = vmatprep.subr.mxu0 %v396
    %963 = vmatpush1.msra.mxu0 %v395
    %964 = vmatprep.subr.mxu0 %v399
    %965 = vmatpush1.msra.mxu0 %v398
    %966 = vmatprep.subr.mxu0 %v402
    %967 = vmatpush1.msra.mxu0 %v401
    %968 = vmatprep.subr.mxu0 %v405
    %969 = vmatpush1.msra.mxu0 %v404
    %970 = vmatprep.subr.mxu0 %v408
    %971 = vmatpush1.msra.mxu0 %v407
    %972 = vmatprep.subr.mxu0 %v411
    %973 = vmatpush1.msra.mxu0 %v410
    %974 = vmatprep.subr.mxu0 %v414
    %975 = vmatpush1.msra.mxu0 %v413
    %976 = vmatprep.subr.mxu0 %v417
    %977 = vmatpush1.msra.mxu0 %v416
    %978 = vmatprep.subr.mxu0 %v420
    %979 = vmatpush1.msra.mxu0 %v419
    %980 = vmatprep.subr.mxu0 %v423
    %981 = vmatpush1.msra.mxu0 %v422
    %982 = vmatprep.subr.mxu0 %v426
    %983 = vmatpush1.msra.mxu0 %v425
    %984 = vmatprep.subr.mxu0 %v429
    %985 = vmatpush1.msra.mxu0 %v428
    %986 = vmatprep.subr.mxu0 0.0
    %987 = vmatpush1.msra.mxu0 0.0
    %988 = vmatprep.subr.mxu0 0.0
    %989 = vmatpush1.msra.mxu0 0.0
    %990 = vmatprep.subr.mxu0 0.0
    %991 = vmatpush1.msra.mxu0 0.0
    %992 = vmatprep.subr.mxu0 0.0
    %993 = vmatpush1.msra.mxu0 0.0
    %994 = vmatprep.subr.mxu0 0.0
    %995 = vmatpush1.msra.mxu0 0.0
    %996 = vmatprep.subr.mxu0 0.0
    %997 = vmatpush1.msra.mxu0 0.0
    %998 = vmatprep.subr.mxu0 0.0
    %999 = vmatpush1.msra.mxu0 0.0
    %1000 = vmatprep.subr.mxu0 0.0
    %1001 = vmatpush1.msra.mxu0 0.0
    %1002 = vmatprep.subr.mxu0 0.0
    %1003 = vmatpush1.msra.mxu0 0.0
    %1004 = vmatprep.subr.mxu0 0.0
    %1005 = vmatpush1.msra.mxu0 0.0
    %1006 = vmatprep.subr.mxu0 0.0
    %1007 = vmatpush1.msra.mxu0 0.0
    %1008 = vmatprep.subr.mxu0 0.0
    %1009 = vmatpush1.msra.mxu0 0.0
    %1010 = vmatprep.subr.mxu0 0.0
    %1011 = vmatpush1.msra.mxu0 0.0
    %1012 = vmatprep.subr.mxu0 0.0
    %1013 = vmatpush1.msra.mxu0 0.0
    %1014 = vmatprep.subr.mxu0 0.0
    %1015 = vmatpush1.msra.mxu0 0.0
    %1016 = vmatprep.subr.mxu0 0.0
    %1017 = vmatpush1.msra.mxu0 0.0
    %1018 = vmatprep.mubr.f32.mxu0 0.0
    %1019 = vmatmul.mubr.f32.gmra.mrb[0].mxu0 %v945
    %v1020 = vpop.f32.mrb[0].mxu0
    %v1021 = vadd.f32 0.0, %v1020
    %v1022 = vpop.f32.mrb[0].mxu0
    %v1023 = vadd.f32 0.0, %v1022
    %1024 = vdwg.mxu0
    %1025 = vmatprep.subr.mxu0 0.0
    %1026 = vmatpush1.msra.mxu0 %v385
    %1027 = vmatprep.subr.mxu0 0.0
    %1028 = vmatpush1.msra.mxu0 %v388
    %1029 = vmatprep.subr.mxu0 0.0
    %1030 = vmatpush1.msra.mxu0 %v391
    %1031 = vmatprep.subr.mxu0 0.0
    %1032 = vmatpush1.msra.mxu0 %v394
    %1033 = vmatprep.subr.mxu0 0.0
    %1034 = vmatpush1.msra.mxu0 %v397
    %1035 = vmatprep.subr.mxu0 0.0
    %1036 = vmatpush1.msra.mxu0 %v400
    %1037 = vmatprep.subr.mxu0 0.0
    %1038 = vmatpush1.msra.mxu0 %v403
    %1039 = vmatprep.subr.mxu0 0.0
    %1040 = vmatpush1.msra.mxu0 %v406
    %1041 = vmatprep.subr.mxu0 0.0
    %1042 = vmatpush1.msra.mxu0 %v409
    %1043 = vmatprep.subr.mxu0 0.0
    %1044 = vmatpush1.msra.mxu0 %v412
    %1045 = vmatprep.subr.mxu0 0.0
    %1046 = vmatpush1.msra.mxu0 %v415
    %1047 = vmatprep.subr.mxu0 0.0
    %1048 = vmatpush1.msra.mxu0 %v418
    %1049 = vmatprep.subr.mxu0 0.0
    %1050 = vmatpush1.msra.mxu0 %v421
    %1051 = vmatprep.subr.mxu0 0.0
    %1052 = vmatpush1.msra.mxu0 %v424
    %1053 = vmatprep.subr.mxu0 0.0
    %1054 = vmatpush1.msra.mxu0 %v427
    %1055 = vmatprep.subr.mxu0 0.0
    %1056 = vmatpush1.msra.mxu0 %v430
    %1057 = vmatprep.subr.mxu0 0.0
    %1058 = vmatpush1.msra.mxu0 0.0
    %1059 = vmatprep.subr.mxu0 0.0
    %1060 = vmatpush1.msra.mxu0 0.0
    %1061 = vmatprep.subr.mxu0 0.0
    %1062 = vmatpush1.msra.mxu0 0.0
    %1063 = vmatprep.subr.mxu0 0.0
    %1064 = vmatpush1.msra.mxu0 0.0
    %1065 = vmatprep.subr.mxu0 0.0
    %1066 = vmatpush1.msra.mxu0 0.0
    %1067 = vmatprep.subr.mxu0 0.0
    %1068 = vmatpush1.msra.mxu0 0.0
    %1069 = vmatprep.subr.mxu0 0.0
    %1070 = vmatpush1.msra.mxu0 0.0
    %1071 = vmatprep.subr.mxu0 0.0
    %1072 = vmatpush1.msra.mxu0 0.0
    %1073 = vmatprep.subr.mxu0 0.0
    %1074 = vmatpush1.msra.mxu0 0.0
    %1075 = vmatprep.subr.mxu0 0.0
    %1076 = vmatpush1.msra.mxu0 0.0
    %1077 = vmatprep.subr.mxu0 0.0
    %1078 = vmatpush1.msra.mxu0 0.0
    %1079 = vmatprep.subr.mxu0 0.0
    %1080 = vmatpush1.msra.mxu0 0.0
    %1081 = vmatprep.subr.mxu0 0.0
    %1082 = vmatpush1.msra.mxu0 0.0
    %1083 = vmatprep.subr.mxu0 0.0
    %1084 = vmatpush1.msra.mxu0 0.0
    %1085 = vmatprep.subr.mxu0 0.0
    %1086 = vmatpush1.msra.mxu0 0.0
    %1087 = vmatprep.subr.mxu0 0.0
    %1088 = vmatpush1.msra.mxu0 0.0
    %1089 = vmatprep.mubr.f32.mxu0 0.0
    %1090 = vmatmul.mubr.f32.gmra.mrb[0].mxu0 %v945
    %v1091 = vpop.f32.mrb[0].mxu0
    %v1092 = vadd.f32 0.0, %v1091
    %v1093 = vpop.f32.mrb[0].mxu0
    %1094 = vdwg.mxu0
    %v1095 = vadd.f32 %v951, %v1021
    %v1096 = vxor.u32 %v1095, 2147483648
    %v1097 = vmul.f32 %v1096, 1.442695
    %v1098 = vpow.pop %v1097
    %v1099 = vadd.f32 %v1098, 1.0
    %v1100 = vrcp.pop %v1099
    %v1101 = vmul.f32 1.0, %v1100
    %v1102 = vadd.f32 %v952, %v1023
    %v1103 = vxor.u32 %v1102, 2147483648
    %v1104 = vmul.f32 %v1103, 1.442695
    %v1105 = vpow.pop %v1104
    %v1106 = vadd.f32 %v1105, 1.0
    %v1107 = vrcp.pop %v1106
    %v1108 = vmul.f32 1.0, %v1107
    %v1109 = vadd.f32 %v1092, %v436
    %v1110 = vmul.f32 %v1101, %v1109
    %v1111 = vadd.f32 %v953, %v1110
    %v1112 = vtanh.pop %v1111
    %v1113 = vsub.f32 %v945, %v1112
    %v1114 = vmul.f32 %v1108, %v1113
    %v1115 = vadd.f32 %v1112, %v1114
    %s1116 = scalar_lea.vmem [#allocation10], 24
    %1117 = vst [vmem:[%s1116] sm:$0xff] %v1115
    %s1118 = smul.u32 4, 3
    %s1119 = smul.addr %s1118, 8
    %s1120 = scalar_lea.vmem [#allocation2], %s1119
    %v1121 = vld [vmem:[%s1120] sm:$0xff]
    %v1122 = vld [vmem:[%s1120 + $0x8] sm:$0xff]
    %v1123 = vld [vmem:[%s1120 + $0x10] sm:$0xff]
    %1124 = vmatprep.subr.mxu0 %v384
    %1125 = vmatpush1.msra.mxu0 %v383
    %1126 = vmatprep.subr.mxu0 %v387
    %1127 = vmatpush1.msra.mxu0 %v386
    %1128 = vmatprep.subr.mxu0 %v390
    %1129 = vmatpush1.msra.mxu0 %v389
    %1130 = vmatprep.subr.mxu0 %v393
    %1131 = vmatpush1.msra.mxu0 %v392
    %1132 = vmatprep.subr.mxu0 %v396
    %1133 = vmatpush1.msra.mxu0 %v395
    %1134 = vmatprep.subr.mxu0 %v399
    %1135 = vmatpush1.msra.mxu0 %v398
    %1136 = vmatprep.subr.mxu0 %v402
    %1137 = vmatpush1.msra.mxu0 %v401
    %1138 = vmatprep.subr.mxu0 %v405
    %1139 = vmatpush1.msra.mxu0 %v404
    %1140 = vmatprep.subr.mxu0 %v408
    %1141 = vmatpush1.msra.mxu0 %v407
    %1142 = vmatprep.subr.mxu0 %v411
    %1143 = vmatpush1.msra.mxu0 %v410
    %1144 = vmatprep.subr.mxu0 %v414
    %1145 = vmatpush1.msra.mxu0 %v413
    %1146 = vmatprep.subr.mxu0 %v417
    %1147 = vmatpush1.msra.mxu0 %v416
    %1148 = vmatprep.subr.mxu0 %v420
    %1149 = vmatpush1.msra.mxu0 %v419
    %1150 = vmatprep.subr.mxu0 %v423
    %1151 = vmatpush1.msra.mxu0 %v422
    %1152 = vmatprep.subr.mxu0 %v426
    %1153 = vmatpush1.msra.mxu0 %v425
    %1154 = vmatprep.subr.mxu0 %v429
    %1155 = vmatpush1.msra.mxu0 %v428
    %1156 = vmatprep.subr.mxu0 0.0
    %1157 = vmatpush1.msra.mxu0 0.0
    %1158 = vmatprep.subr.mxu0 0.0
    %1159 = vmatpush1.msra.mxu0 0.0
    %1160 = vmatprep.subr.mxu0 0.0
    %1161 = vmatpush1.msra.mxu0 0.0
    %1162 = vmatprep.subr.mxu0 0.0
    %1163 = vmatpush1.msra.mxu0 0.0
    %1164 = vmatprep.subr.mxu0 0.0
    %1165 = vmatpush1.msra.mxu0 0.0
    %1166 = vmatprep.subr.mxu0 0.0
    %1167 = vmatpush1.msra.mxu0 0.0
    %1168 = vmatprep.subr.mxu0 0.0
    %1169 = vmatpush1.msra.mxu0 0.0
    %1170 = vmatprep.subr.mxu0 0.0
    %1171 = vmatpush1.msra.mxu0 0.0
    %1172 = vmatprep.subr.mxu0 0.0
    %1173 = vmatpush1.msra.mxu0 0.0
    %1174 = vmatprep.subr.mxu0 0.0
    %1175 = vmatpush1.msra.mxu0 0.0
    %1176 = vmatprep.subr.mxu0 0.0
    %1177 = vmatpush1.msra.mxu0 0.0
    %1178 = vmatprep.subr.mxu0 0.0
    %1179 = vmatpush1.msra.mxu0 0.0
    %1180 = vmatprep.subr.mxu0 0.0
    %1181 = vmatpush1.msra.mxu0 0.0
    %1182 = vmatprep.subr.mxu0 0.0
    %1183 = vmatpush1.msra.mxu0 0.0
    %1184 = vmatprep.subr.mxu0 0.0
    %1185 = vmatpush1.msra.mxu0 0.0
    %1186 = vmatprep.subr.mxu0 0.0
    %1187 = vmatpush1.msra.mxu0 0.0
    %1188 = vmatprep.mubr.f32.mxu0 0.0
    %1189 = vmatmul.mubr.f32.gmra.mrb[0].mxu0 %v1115
    %v1190 = vpop.f32.mrb[0].mxu0
    %v1191 = vadd.f32 0.0, %v1190
    %v1192 = vpop.f32.mrb[0].mxu0
    %v1193 = vadd.f32 0.0, %v1192
    %1194 = vdwg.mxu0
    %1195 = vmatprep.subr.mxu0 0.0
    %1196 = vmatpush1.msra.mxu0 %v385
    %1197 = vmatprep.subr.mxu0 0.0
    %1198 = vmatpush1.msra.mxu0 %v388
    %1199 = vmatprep.subr.mxu0 0.0
    %1200 = vmatpush1.msra.mxu0 %v391
    %1201 = vmatprep.subr.mxu0 0.0
    %1202 = vmatpush1.msra.mxu0 %v394
    %1203 = vmatprep.subr.mxu0 0.0
    %1204 = vmatpush1.msra.mxu0 %v397
    %1205 = vmatprep.subr.mxu0 0.0
    %1206 = vmatpush1.msra.mxu0 %v400
    %1207 = vmatprep.subr.mxu0 0.0
    %1208 = vmatpush1.msra.mxu0 %v403
    %1209 = vmatprep.subr.mxu0 0.0
    %1210 = vmatpush1.msra.mxu0 %v406
    %1211 = vmatprep.subr.mxu0 0.0
    %1212 = vmatpush1.msra.mxu0 %v409
    %1213 = vmatprep.subr.mxu0 0.0
    %1214 = vmatpush1.msra.mxu0 %v412
    %1215 = vmatprep.subr.mxu0 0.0
    %1216 = vmatpush1.msra.mxu0 %v415
    %1217 = vmatprep.subr.mxu0 0.0
    %1218 = vmatpush1.msra.mxu0 %v418
    %1219 = vmatprep.subr.mxu0 0.0
    %1220 = vmatpush1.msra.mxu0 %v421
    %1221 = vmatprep.subr.mxu0 0.0
    %1222 = vmatpush1.msra.mxu0 %v424
    %1223 = vmatprep.subr.mxu0 0.0
    %1224 = vmatpush1.msra.mxu0 %v427
    %1225 = vmatprep.subr.mxu0 0.0
    %1226 = vmatpush1.msra.mxu0 %v430
    %1227 = vmatprep.subr.mxu0 0.0
    %1228 = vmatpush1.msra.mxu0 0.0
    %1229 = vmatprep.subr.mxu0 0.0
    %1230 = vmatpush1.msra.mxu0 0.0
    %1231 = vmatprep.subr.mxu0 0.0
    %1232 = vmatpush1.msra.mxu0 0.0
    %1233 = vmatprep.subr.mxu0 0.0
    %1234 = vmatpush1.msra.mxu0 0.0
    %1235 = vmatprep.subr.mxu0 0.0
    %1236 = vmatpush1.msra.mxu0 0.0
    %1237 = vmatprep.subr.mxu0 0.0
    %1238 = vmatpush1.msra.mxu0 0.0
    %1239 = vmatprep.subr.mxu0 0.0
    %1240 = vmatpush1.msra.mxu0 0.0
    %1241 = vmatprep.subr.mxu0 0.0
    %1242 = vmatpush1.msra.mxu0 0.0
    %1243 = vmatprep.subr.mxu0 0.0
    %1244 = vmatpush1.msra.mxu0 0.0
    %1245 = vmatprep.subr.mxu0 0.0
    %1246 = vmatpush1.msra.mxu0 0.0
    %1247 = vmatprep.subr.mxu0 0.0
    %1248 = vmatpush1.msra.mxu0 0.0
    %1249 = vmatprep.subr.mxu0 0.0
    %1250 = vmatpush1.msra.mxu0 0.0
    %1251 = vmatprep.subr.mxu0 0.0
    %1252 = vmatpush1.msra.mxu0 0.0
    %1253 = vmatprep.subr.mxu0 0.0
    %1254 = vmatpush1.msra.mxu0 0.0
    %1255 = vmatprep.subr.mxu0 0.0
    %1256 = vmatpush1.msra.mxu0 0.0
    %1257 = vmatprep.subr.mxu0 0.0
    %1258 = vmatpush1.msra.mxu0 0.0
    %1259 = vmatprep.mubr.f32.mxu0 0.0
    %1260 = vmatmul.mubr.f32.gmra.mrb[0].mxu0 %v1115
    %v1261 = vpop.f32.mrb[0].mxu0
    %v1262 = vadd.f32 0.0, %v1261
    %v1263 = vpop.f32.mrb[0].mxu0
    %1264 = vdwg.mxu0
    %v1265 = vadd.f32 %v1121, %v1191
    %v1266 = vxor.u32 %v1265, 2147483648
    %v1267 = vmul.f32 %v1266, 1.442695
    %v1268 = vpow.pop %v1267
    %v1269 = vadd.f32 %v1268, 1.0
    %v1270 = vrcp.pop %v1269
    %v1271 = vmul.f32 1.0, %v1270
    %v1272 = vadd.f32 %v1122, %v1193
    %v1273 = vxor.u32 %v1272, 2147483648
    %v1274 = vmul.f32 %v1273, 1.442695
    %v1275 = vpow.pop %v1274
    %v1276 = vadd.f32 %v1275, 1.0
    %v1277 = vrcp.pop %v1276
    %v1278 = vmul.f32 1.0, %v1277
    %v1279 = vadd.f32 %v1262, %v436
    %v1280 = vmul.f32 %v1271, %v1279
    %v1281 = vadd.f32 %v1123, %v1280
    %v1282 = vtanh.pop %v1281
    %v1283 = vsub.f32 %v1115, %v1282
    %v1284 = vmul.f32 %v1278, %v1283
    %v1285 = vadd.f32 %v1282, %v1284
    %s1286 = scalar_lea.vmem [#allocation10], 32
    %1287 = vst [vmem:[%s1286] sm:$0xff] %v1285
    %s1288 = smul.u32 5, 3
    %s1289 = smul.addr %s1288, 8
    %s1290 = scalar_lea.vmem [#allocation2], %s1289
    %v1291 = vld [vmem:[%s1290] sm:$0xff]
    %v1292 = vld [vmem:[%s1290 + $0x8] sm:$0xff]
    %v1293 = vld [vmem:[%s1290 + $0x10] sm:$0xff]
    %1294 = vmatprep.subr.mxu0 %v384
    %1295 = vmatpush1.msra.mxu0 %v383
    %1296 = vmatprep.subr.mxu0 %v387
    %1297 = vmatpush1.msra.mxu0 %v386
    %1298 = vmatprep.subr.mxu0 %v390
    %1299 = vmatpush1.msra.mxu0 %v389
    %1300 = vmatprep.subr.mxu0 %v393
    %1301 = vmatpush1.msra.mxu0 %v392
    %1302 = vmatprep.subr.mxu0 %v396
    %1303 = vmatpush1.msra.mxu0 %v395
    %1304 = vmatprep.subr.mxu0 %v399
    %1305 = vmatpush1.msra.mxu0 %v398
    %1306 = vmatprep.subr.mxu0 %v402
    %1307 = vmatpush1.msra.mxu0 %v401
    %1308 = vmatprep.subr.mxu0 %v405
    %1309 = vmatpush1.msra.mxu0 %v404
    %1310 = vmatprep.subr.mxu0 %v408
    %1311 = vmatpush1.msra.mxu0 %v407
    %1312 = vmatprep.subr.mxu0 %v411
    %1313 = vmatpush1.msra.mxu0 %v410
    %1314 = vmatprep.subr.mxu0 %v414
    %1315 = vmatpush1.msra.mxu0 %v413
    %1316 = vmatprep.subr.mxu0 %v417
    %1317 = vmatpush1.msra.mxu0 %v416
    %1318 = vmatprep.subr.mxu0 %v420
    %1319 = vmatpush1.msra.mxu0 %v419
    %1320 = vmatprep.subr.mxu0 %v423
    %1321 = vmatpush1.msra.mxu0 %v422
    %1322 = vmatprep.subr.mxu0 %v426
    %1323 = vmatpush1.msra.mxu0 %v425
    %1324 = vmatprep.subr.mxu0 %v429
    %1325 = vmatpush1.msra.mxu0 %v428
    %1326 = vmatprep.subr.mxu0 0.0
    %1327 = vmatpush1.msra.mxu0 0.0
    %1328 = vmatprep.subr.mxu0 0.0
    %1329 = vmatpush1.msra.mxu0 0.0
    %1330 = vmatprep.subr.mxu0 0.0
    %1331 = vmatpush1.msra.mxu0 0.0
    %1332 = vmatprep.subr.mxu0 0.0
    %1333 = vmatpush1.msra.mxu0 0.0
    %1334 = vmatprep.subr.mxu0 0.0
    %1335 = vmatpush1.msra.mxu0 0.0
    %1336 = vmatprep.subr.mxu0 0.0
    %1337 = vmatpush1.msra.mxu0 0.0
    %1338 = vmatprep.subr.mxu0 0.0
    %1339 = vmatpush1.msra.mxu0 0.0
    %1340 = vmatprep.subr.mxu0 0.0
    %1341 = vmatpush1.msra.mxu0 0.0
    %1342 = vmatprep.subr.mxu0 0.0
    %1343 = vmatpush1.msra.mxu0 0.0
    %1344 = vmatprep.subr.mxu0 0.0
    %1345 = vmatpush1.msra.mxu0 0.0
    %1346 = vmatprep.subr.mxu0 0.0
    %1347 = vmatpush1.msra.mxu0 0.0
    %1348 = vmatprep.subr.mxu0 0.0
    %1349 = vmatpush1.msra.mxu0 0.0
    %1350 = vmatprep.subr.mxu0 0.0
    %1351 = vmatpush1.msra.mxu0 0.0
    %1352 = vmatprep.subr.mxu0 0.0
    %1353 = vmatpush1.msra.mxu0 0.0
    %1354 = vmatprep.subr.mxu0 0.0
    %1355 = vmatpush1.msra.mxu0 0.0
    %1356 = vmatprep.subr.mxu0 0.0
    %1357 = vmatpush1.msra.mxu0 0.0
    %1358 = vmatprep.mubr.f32.mxu0 0.0
    %1359 = vmatmul.mubr.f32.gmra.mrb[0].mxu0 %v1285
    %v1360 = vpop.f32.mrb[0].mxu0
    %v1361 = vadd.f32 0.0, %v1360
    %v1362 = vpop.f32.mrb[0].mxu0
    %v1363 = vadd.f32 0.0, %v1362
    %1364 = vdwg.mxu0
    %1365 = vmatprep.subr.mxu0 0.0
    %1366 = vmatpush1.msra.mxu0 %v385
    %1367 = vmatprep.subr.mxu0 0.0
    %1368 = vmatpush1.msra.mxu0 %v388
    %1369 = vmatprep.subr.mxu0 0.0
    %1370 = vmatpush1.msra.mxu0 %v391
    %1371 = vmatprep.subr.mxu0 0.0
    %1372 = vmatpush1.msra.mxu0 %v394
    %1373 = vmatprep.subr.mxu0 0.0
    %1374 = vmatpush1.msra.mxu0 %v397
    %1375 = vmatprep.subr.mxu0 0.0
    %1376 = vmatpush1.msra.mxu0 %v400
    %1377 = vmatprep.subr.mxu0 0.0
    %1378 = vmatpush1.msra.mxu0 %v403
    %1379 = vmatprep.subr.mxu0 0.0
    %1380 = vmatpush1.msra.mxu0 %v406
    %1381 = vmatprep.subr.mxu0 0.0
    %1382 = vmatpush1.msra.mxu0 %v409
    %1383 = vmatprep.subr.mxu0 0.0
    %1384 = vmatpush1.msra.mxu0 %v412
    %1385 = vmatprep.subr.mxu0 0.0
    %1386 = vmatpush1.msra.mxu0 %v415
    %1387 = vmatprep.subr.mxu0 0.0
    %1388 = vmatpush1.msra.mxu0 %v418
    %1389 = vmatprep.subr.mxu0 0.0
    %1390 = vmatpush1.msra.mxu0 %v421
    %1391 = vmatprep.subr.mxu0 0.0
    %1392 = vmatpush1.msra.mxu0 %v424
    %1393 = vmatprep.subr.mxu0 0.0
    %1394 = vmatpush1.msra.mxu0 %v427
    %1395 = vmatprep.subr.mxu0 0.0
    %1396 = vmatpush1.msra.mxu0 %v430
    %1397 = vmatprep.subr.mxu0 0.0
    %1398 = vmatpush1.msra.mxu0 0.0
    %1399 = vmatprep.subr.mxu0 0.0
    %1400 = vmatpush1.msra.mxu0 0.0
    %1401 = vmatprep.subr.mxu0 0.0
    %1402 = vmatpush1.msra.mxu0 0.0
    %1403 = vmatprep.subr.mxu0 0.0
    %1404 = vmatpush1.msra.mxu0 0.0
    %1405 = vmatprep.subr.mxu0 0.0
    %1406 = vmatpush1.msra.mxu0 0.0
    %1407 = vmatprep.subr.mxu0 0.0
    %1408 = vmatpush1.msra.mxu0 0.0
    %1409 = vmatprep.subr.mxu0 0.0
    %1410 = vmatpush1.msra.mxu0 0.0
    %1411 = vmatprep.subr.mxu0 0.0
    %1412 = vmatpush1.msra.mxu0 0.0
    %1413 = vmatprep.subr.mxu0 0.0
    %1414 = vmatpush1.msra.mxu0 0.0
    %1415 = vmatprep.subr.mxu0 0.0
    %1416 = vmatpush1.msra.mxu0 0.0
    %1417 = vmatprep.subr.mxu0 0.0
    %1418 = vmatpush1.msra.mxu0 0.0
    %1419 = vmatprep.subr.mxu0 0.0
    %1420 = vmatpush1.msra.mxu0 0.0
    %1421 = vmatprep.subr.mxu0 0.0
    %1422 = vmatpush1.msra.mxu0 0.0
    %1423 = vmatprep.subr.mxu0 0.0
    %1424 = vmatpush1.msra.mxu0 0.0
    %1425 = vmatprep.subr.mxu0 0.0
    %1426 = vmatpush1.msra.mxu0 0.0
    %1427 = vmatprep.subr.mxu0 0.0
    %1428 = vmatpush1.msra.mxu0 0.0
    %1429 = vmatprep.mubr.f32.mxu0 0.0
    %1430 = vmatmul.mubr.f32.gmra.mrb[0].mxu0 %v1285
    %v1431 = vpop.f32.mrb[0].mxu0
    %v1432 = vadd.f32 0.0, %v1431
    %v1433 = vpop.f32.mrb[0].mxu0
    %1434 = vdwg.mxu0
    %v1435 = vadd.f32 %v1291, %v1361
    %v1436 = vxor.u32 %v1435, 2147483648
    %v1437 = vmul.f32 %v1436, 1.442695
    %v1438 = vpow.pop %v1437
    %v1439 = vadd.f32 %v1438, 1.0
    %v1440 = vrcp.pop %v1439
    %v1441 = vmul.f32 1.0, %v1440
    %v1442 = vadd.f32 %v1292, %v1363
    %v1443 = vxor.u32 %v1442, 2147483648
    %v1444 = vmul.f32 %v1443, 1.442695
    %v1445 = vpow.pop %v1444
    %v1446 = vadd.f32 %v1445, 1.0
    %v1447 = vrcp.pop %v1446
    %v1448 = vmul.f32 1.0, %v1447
    %v1449 = vadd.f32 %v1432, %v436
    %v1450 = vmul.f32 %v1441, %v1449
    %v1451 = vadd.f32 %v1293, %v1450
    %v1452 = vtanh.pop %v1451
    %v1453 = vsub.f32 %v1285, %v1452
    %v1454 = vmul.f32 %v1448, %v1453
    %v1455 = vadd.f32 %v1452, %v1454
    %s1456 = scalar_lea.vmem [#allocation10], 40
    %1457 = vst [vmem:[%s1456] sm:$0xff] %v1455
    %s1458 = smul.u32 6, 3
    %s1459 = smul.addr %s1458, 8
    %s1460 = scalar_lea.vmem [#allocation2], %s1459
    %v1461 = vld [vmem:[%s1460] sm:$0xff]
    %v1462 = vld [vmem:[%s1460 + $0x8] sm:$0xff]
    %v1463 = vld [vmem:[%s1460 + $0x10] sm:$0xff]
    %1464 = vmatprep.subr.mxu0 %v384
    %1465 = vmatpush1.msra.mxu0 %v383
    %1466 = vmatprep.subr.mxu0 %v387
    %1467 = vmatpush1.msra.mxu0 %v386
    %1468 = vmatprep.subr.mxu0 %v390
    %1469 = vmatpush1.msra.mxu0 %v389
    %1470 = vmatprep.subr.mxu0 %v393
    %1471 = vmatpush1.msra.mxu0 %v392
    %1472 = vmatprep.subr.mxu0 %v396
    %1473 = vmatpush1.msra.mxu0 %v395
    %1474 = vmatprep.subr.mxu0 %v399
    %1475 = vmatpush1.msra.mxu0 %v398
    %1476 = vmatprep.subr.mxu0 %v402
    %1477 = vmatpush1.msra.mxu0 %v401
    %1478 = vmatprep.subr.mxu0 %v405
    %1479 = vmatpush1.msra.mxu0 %v404
    %1480 = vmatprep.subr.mxu0 %v408
    %1481 = vmatpush1.msra.mxu0 %v407
    %1482 = vmatprep.subr.mxu0 %v411
    %1483 = vmatpush1.msra.mxu0 %v410
    %1484 = vmatprep.subr.mxu0 %v414
    %1485 = vmatpush1.msra.mxu0 %v413
    %1486 = vmatprep.subr.mxu0 %v417
    %1487 = vmatpush1.msra.mxu0 %v416
    %1488 = vmatprep.subr.mxu0 %v420
    %1489 = vmatpush1.msra.mxu0 %v419
    %1490 = vmatprep.subr.mxu0 %v423
    %1491 = vmatpush1.msra.mxu0 %v422
    %1492 = vmatprep.subr.mxu0 %v426
    %1493 = vmatpush1.msra.mxu0 %v425
    %1494 = vmatprep.subr.mxu0 %v429
    %1495 = vmatpush1.msra.mxu0 %v428
    %1496 = vmatprep.subr.mxu0 0.0
    %1497 = vmatpush1.msra.mxu0 0.0
    %1498 = vmatprep.subr.mxu0 0.0
    %1499 = vmatpush1.msra.mxu0 0.0
    %1500 = vmatprep.subr.mxu0 0.0
    %1501 = vmatpush1.msra.mxu0 0.0
    %1502 = vmatprep.subr.mxu0 0.0
    %1503 = vmatpush1.msra.mxu0 0.0
    %1504 = vmatprep.subr.mxu0 0.0
    %1505 = vmatpush1.msra.mxu0 0.0
    %1506 = vmatprep.subr.mxu0 0.0
    %1507 = vmatpush1.msra.mxu0 0.0
    %1508 = vmatprep.subr.mxu0 0.0
    %1509 = vmatpush1.msra.mxu0 0.0
    %1510 = vmatprep.subr.mxu0 0.0
    %1511 = vmatpush1.msra.mxu0 0.0
    %1512 = vmatprep.subr.mxu0 0.0
    %1513 = vmatpush1.msra.mxu0 0.0
    %1514 = vmatprep.subr.mxu0 0.0
    %1515 = vmatpush1.msra.mxu0 0.0
    %1516 = vmatprep.subr.mxu0 0.0
    %1517 = vmatpush1.msra.mxu0 0.0
    %1518 = vmatprep.subr.mxu0 0.0
    %1519 = vmatpush1.msra.mxu0 0.0
    %1520 = vmatprep.subr.mxu0 0.0
    %1521 = vmatpush1.msra.mxu0 0.0
    %1522 = vmatprep.subr.mxu0 0.0
    %1523 = vmatpush1.msra.mxu0 0.0
    %1524 = vmatprep.subr.mxu0 0.0
    %1525 = vmatpush1.msra.mxu0 0.0
    %1526 = vmatprep.subr.mxu0 0.0
    %1527 = vmatpush1.msra.mxu0 0.0
    %1528 = vmatprep.mubr.f32.mxu0 0.0
    %1529 = vmatmul.mubr.f32.gmra.mrb[0].mxu0 %v1455
    %v1530 = vpop.f32.mrb[0].mxu0
    %v1531 = vadd.f32 0.0, %v1530
    %v1532 = vpop.f32.mrb[0].mxu0
    %v1533 = vadd.f32 0.0, %v1532
    %1534 = vdwg.mxu0
    %1535 = vmatprep.subr.mxu0 0.0
    %1536 = vmatpush1.msra.mxu0 %v385
    %1537 = vmatprep.subr.mxu0 0.0
    %1538 = vmatpush1.msra.mxu0 %v388
    %1539 = vmatprep.subr.mxu0 0.0
    %1540 = vmatpush1.msra.mxu0 %v391
    %1541 = vmatprep.subr.mxu0 0.0
    %1542 = vmatpush1.msra.mxu0 %v394
    %1543 = vmatprep.subr.mxu0 0.0
    %1544 = vmatpush1.msra.mxu0 %v397
    %1545 = vmatprep.subr.mxu0 0.0
    %1546 = vmatpush1.msra.mxu0 %v400
    %1547 = vmatprep.subr.mxu0 0.0
    %1548 = vmatpush1.msra.mxu0 %v403
    %1549 = vmatprep.subr.mxu0 0.0
    %1550 = vmatpush1.msra.mxu0 %v406
    %1551 = vmatprep.subr.mxu0 0.0
    %1552 = vmatpush1.msra.mxu0 %v409
    %1553 = vmatprep.subr.mxu0 0.0
    %1554 = vmatpush1.msra.mxu0 %v412
    %1555 = vmatprep.subr.mxu0 0.0
    %1556 = vmatpush1.msra.mxu0 %v415
    %1557 = vmatprep.subr.mxu0 0.0
    %1558 = vmatpush1.msra.mxu0 %v418
    %1559 = vmatprep.subr.mxu0 0.0
    %1560 = vmatpush1.msra.mxu0 %v421
    %1561 = vmatprep.subr.mxu0 0.0
    %1562 = vmatpush1.msra.mxu0 %v424
    %1563 = vmatprep.subr.mxu0 0.0
    %1564 = vmatpush1.msra.mxu0 %v427
    %1565 = vmatprep.subr.mxu0 0.0
    %1566 = vmatpush1.msra.mxu0 %v430
    %1567 = vmatprep.subr.mxu0 0.0
    %1568 = vmatpush1.msra.mxu0 0.0
    %1569 = vmatprep.subr.mxu0 0.0
    %1570 = vmatpush1.msra.mxu0 0.0
    %1571 = vmatprep.subr.mxu0 0.0
    %1572 = vmatpush1.msra.mxu0 0.0
    %1573 = vmatprep.subr.mxu0 0.0
    %1574 = vmatpush1.msra.mxu0 0.0
    %1575 = vmatprep.subr.mxu0 0.0
    %1576 = vmatpush1.msra.mxu0 0.0
    %1577 = vmatprep.subr.mxu0 0.0
    %1578 = vmatpush1.msra.mxu0 0.0
    %1579 = vmatprep.subr.mxu0 0.0
    %1580 = vmatpush1.msra.mxu0 0.0
    %1581 = vmatprep.subr.mxu0 0.0
    %1582 = vmatpush1.msra.mxu0 0.0
    %1583 = vmatprep.subr.mxu0 0.0
    %1584 = vmatpush1.msra.mxu0 0.0
    %1585 = vmatprep.subr.mxu0 0.0
    %1586 = vmatpush1.msra.mxu0 0.0
    %1587 = vmatprep.subr.mxu0 0.0
    %1588 = vmatpush1.msra.mxu0 0.0
    %1589 = vmatprep.subr.mxu0 0.0
    %1590 = vmatpush1.msra.mxu0 0.0
    %1591 = vmatprep.subr.mxu0 0.0
    %1592 = vmatpush1.msra.mxu0 0.0
    %1593 = vmatprep.subr.mxu0 0.0
    %1594 = vmatpush1.msra.mxu0 0.0
    %1595 = vmatprep.subr.mxu0 0.0
    %1596 = vmatpush1.msra.mxu0 0.0
    %1597 = vmatprep.subr.mxu0 0.0
    %1598 = vmatpush1.msra.mxu0 0.0
    %1599 = vmatprep.mubr.f32.mxu0 0.0
    %1600 = vmatmul.mubr.f32.gmra.mrb[0].mxu0 %v1455
    %v1601 = vpop.f32.mrb[0].mxu0
    %v1602 = vadd.f32 0.0, %v1601
    %v1603 = vpop.f32.mrb[0].mxu0
    %1604 = vdwg.mxu0
    %v1605 = vadd.f32 %v1461, %v1531
    %v1606 = vxor.u32 %v1605, 2147483648
    %v1607 = vmul.f32 %v1606, 1.442695
    %v1608 = vpow.pop %v1607
    %v1609 = vadd.f32 %v1608, 1.0
    %v1610 = vrcp.pop %v1609
    %v1611 = vmul.f32 1.0, %v1610
    %v1612 = vadd.f32 %v1462, %v1533
    %v1613 = vxor.u32 %v1612, 2147483648
    %v1614 = vmul.f32 %v1613, 1.442695
    %v1615 = vpow.pop %v1614
    %v1616 = vadd.f32 %v1615, 1.0
    %v1617 = vrcp.pop %v1616
    %v1618 = vmul.f32 1.0, %v1617
    %v1619 = vadd.f32 %v1602, %v436
    %v1620 = vmul.f32 %v1611, %v1619
    %v1621 = vadd.f32 %v1463, %v1620
    %v1622 = vtanh.pop %v1621
    %v1623 = vsub.f32 %v1455, %v1622
    %v1624 = vmul.f32 %v1618, %v1623
    %v1625 = vadd.f32 %v1622, %v1624
    %s1626 = scalar_lea.vmem [#allocation10], 48
    %1627 = vst [vmem:[%s1626] sm:$0xff] %v1625
    %s1628 = smul.u32 7, 3
    %s1629 = smul.addr %s1628, 8
    %s1630 = scalar_lea.vmem [#allocation2], %s1629
    %v1631 = vld [vmem:[%s1630] sm:$0xff]
    %v1632 = vld [vmem:[%s1630 + $0x8] sm:$0xff]
    %v1633 = vld [vmem:[%s1630 + $0x10] sm:$0xff]
    %1634 = vmatprep.subr.mxu0 %v384
    %1635 = vmatpush1.msra.mxu0 %v383
    %1636 = vmatprep.subr.mxu0 %v387
    %1637 = vmatpush1.msra.mxu0 %v386
    %1638 = vmatprep.subr.mxu0 %v390
    %1639 = vmatpush1.msra.mxu0 %v389
    %1640 = vmatprep.subr.mxu0 %v393
    %1641 = vmatpush1.msra.mxu0 %v392
    %1642 = vmatprep.subr.mxu0 %v396
    %1643 = vmatpush1.msra.mxu0 %v395
    %1644 = vmatprep.subr.mxu0 %v399
    %1645 = vmatpush1.msra.mxu0 %v398
    %1646 = vmatprep.subr.mxu0 %v402
    %1647 = vmatpush1.msra.mxu0 %v401
    %1648 = vmatprep.subr.mxu0 %v405
    %1649 = vmatpush1.msra.mxu0 %v404
    %1650 = vmatprep.subr.mxu0 %v408
    %1651 = vmatpush1.msra.mxu0 %v407
    %1652 = vmatprep.subr.mxu0 %v411
    %1653 = vmatpush1.msra.mxu0 %v410
    %1654 = vmatprep.subr.mxu0 %v414
    %1655 = vmatpush1.msra.mxu0 %v413
    %1656 = vmatprep.subr.mxu0 %v417
    %1657 = vmatpush1.msra.mxu0 %v416
    %1658 = vmatprep.subr.mxu0 %v420
    %1659 = vmatpush1.msra.mxu0 %v419
    %1660 = vmatprep.subr.mxu0 %v423
    %1661 = vmatpush1.msra.mxu0 %v422
    %1662 = vmatprep.subr.mxu0 %v426
    %1663 = vmatpush1.msra.mxu0 %v425
    %1664 = vmatprep.subr.mxu0 %v429
    %1665 = vmatpush1.msra.mxu0 %v428
    %1666 = vmatprep.subr.mxu0 0.0
    %1667 = vmatpush1.msra.mxu0 0.0
    %1668 = vmatprep.subr.mxu0 0.0
    %1669 = vmatpush1.msra.mxu0 0.0
    %1670 = vmatprep.subr.mxu0 0.0
    %1671 = vmatpush1.msra.mxu0 0.0
    %1672 = vmatprep.subr.mxu0 0.0
    %1673 = vmatpush1.msra.mxu0 0.0
    %1674 = vmatprep.subr.mxu0 0.0
    %1675 = vmatpush1.msra.mxu0 0.0
    %1676 = vmatprep.subr.mxu0 0.0
    %1677 = vmatpush1.msra.mxu0 0.0
    %1678 = vmatprep.subr.mxu0 0.0
    %1679 = vmatpush1.msra.mxu0 0.0
    %1680 = vmatprep.subr.mxu0 0.0
    %1681 = vmatpush1.msra.mxu0 0.0
    %1682 = vmatprep.subr.mxu0 0.0
    %1683 = vmatpush1.msra.mxu0 0.0
    %1684 = vmatprep.subr.mxu0 0.0
    %1685 = vmatpush1.msra.mxu0 0.0
    %1686 = vmatprep.subr.mxu0 0.0
    %1687 = vmatpush1.msra.mxu0 0.0
    %1688 = vmatprep.subr.mxu0 0.0
    %1689 = vmatpush1.msra.mxu0 0.0
    %1690 = vmatprep.subr.mxu0 0.0
    %1691 = vmatpush1.msra.mxu0 0.0
    %1692 = vmatprep.subr.mxu0 0.0
    %1693 = vmatpush1.msra.mxu0 0.0
    %1694 = vmatprep.subr.mxu0 0.0
    %1695 = vmatpush1.msra.mxu0 0.0
    %1696 = vmatprep.subr.mxu0 0.0
    %1697 = vmatpush1.msra.mxu0 0.0
    %1698 = vmatprep.mubr.f32.mxu0 0.0
    %1699 = vmatmul.mubr.f32.gmra.mrb[0].mxu0 %v1625
    %v1700 = vpop.f32.mrb[0].mxu0
    %v1701 = vadd.f32 0.0, %v1700
    %v1702 = vpop.f32.mrb[0].mxu0
    %v1703 = vadd.f32 0.0, %v1702
    %1704 = vdwg.mxu0
    %1705 = vmatprep.subr.mxu0 0.0
    %1706 = vmatpush1.msra.mxu0 %v385
    %1707 = vmatprep.subr.mxu0 0.0
    %1708 = vmatpush1.msra.mxu0 %v388
    %1709 = vmatprep.subr.mxu0 0.0
    %1710 = vmatpush1.msra.mxu0 %v391
    %1711 = vmatprep.subr.mxu0 0.0
    %1712 = vmatpush1.msra.mxu0 %v394
    %1713 = vmatprep.subr.mxu0 0.0
    %1714 = vmatpush1.msra.mxu0 %v397
    %1715 = vmatprep.subr.mxu0 0.0
    %1716 = vmatpush1.msra.mxu0 %v400
    %1717 = vmatprep.subr.mxu0 0.0
    %1718 = vmatpush1.msra.mxu0 %v403
    %1719 = vmatprep.subr.mxu0 0.0
    %1720 = vmatpush1.msra.mxu0 %v406
    %1721 = vmatprep.subr.mxu0 0.0
    %1722 = vmatpush1.msra.mxu0 %v409
    %1723 = vmatprep.subr.mxu0 0.0
    %1724 = vmatpush1.msra.mxu0 %v412
    %1725 = vmatprep.subr.mxu0 0.0
    %1726 = vmatpush1.msra.mxu0 %v415
    %1727 = vmatprep.subr.mxu0 0.0
    %1728 = vmatpush1.msra.mxu0 %v418
    %1729 = vmatprep.subr.mxu0 0.0
    %1730 = vmatpush1.msra.mxu0 %v421
    %1731 = vmatprep.subr.mxu0 0.0
    %1732 = vmatpush1.msra.mxu0 %v424
    %1733 = vmatprep.subr.mxu0 0.0
    %1734 = vmatpush1.msra.mxu0 %v427
    %1735 = vmatprep.subr.mxu0 0.0
    %1736 = vmatpush1.msra.mxu0 %v430
    %1737 = vmatprep.subr.mxu0 0.0
    %1738 = vmatpush1.msra.mxu0 0.0
    %1739 = vmatprep.subr.mxu0 0.0
    %1740 = vmatpush1.msra.mxu0 0.0
    %1741 = vmatprep.subr.mxu0 0.0
    %1742 = vmatpush1.msra.mxu0 0.0
    %1743 = vmatprep.subr.mxu0 0.0
    %1744 = vmatpush1.msra.mxu0 0.0
    %1745 = vmatprep.subr.mxu0 0.0
    %1746 = vmatpush1.msra.mxu0 0.0
    %1747 = vmatprep.subr.mxu0 0.0
    %1748 = vmatpush1.msra.mxu0 0.0
    %1749 = vmatprep.subr.mxu0 0.0
    %1750 = vmatpush1.msra.mxu0 0.0
    %1751 = vmatprep.subr.mxu0 0.0
    %1752 = vmatpush1.msra.mxu0 0.0
    %1753 = vmatprep.subr.mxu0 0.0
    %1754 = vmatpush1.msra.mxu0 0.0
    %1755 = vmatprep.subr.mxu0 0.0
    %1756 = vmatpush1.msra.mxu0 0.0
    %1757 = vmatprep.subr.mxu0 0.0
    %1758 = vmatpush1.msra.mxu0 0.0
    %1759 = vmatprep.subr.mxu0 0.0
    %1760 = vmatpush1.msra.mxu0 0.0
    %1761 = vmatprep.subr.mxu0 0.0
    %1762 = vmatpush1.msra.mxu0 0.0
    %1763 = vmatprep.subr.mxu0 0.0
    %1764 = vmatpush1.msra.mxu0 0.0
    %1765 = vmatprep.subr.mxu0 0.0
    %1766 = vmatpush1.msra.mxu0 0.0
    %1767 = vmatprep.subr.mxu0 0.0
    %1768 = vmatpush1.msra.mxu0 0.0
    %1769 = vmatprep.mubr.f32.mxu0 0.0
    %1770 = vmatmul.mubr.f32.gmra.mrb[0].mxu0 %v1625
    %v1771 = vpop.f32.mrb[0].mxu0
    %v1772 = vadd.f32 0.0, %v1771
    %v1773 = vpop.f32.mrb[0].mxu0
    %1774 = vdwg.mxu0
    %v1775 = vadd.f32 %v1631, %v1701
    %v1776 = vxor.u32 %v1775, 2147483648
    %v1777 = vmul.f32 %v1776, 1.442695
    %v1778 = vpow.pop %v1777
    %v1779 = vadd.f32 %v1778, 1.0
    %v1780 = vrcp.pop %v1779
    %v1781 = vmul.f32 1.0, %v1780
    %v1782 = vadd.f32 %v1632, %v1703
    %v1783 = vxor.u32 %v1782, 2147483648
    %v1784 = vmul.f32 %v1783, 1.442695
    %v1785 = vpow.pop %v1784
    %v1786 = vadd.f32 %v1785, 1.0
    %v1787 = vrcp.pop %v1786
    %v1788 = vmul.f32 1.0, %v1787
    %v1789 = vadd.f32 %v1772, %v436
    %v1790 = vmul.f32 %v1781, %v1789
    %v1791 = vadd.f32 %v1633, %v1790
    %v1792 = vtanh.pop %v1791
    %v1793 = vsub.f32 %v1625, %v1792
    %v1794 = vmul.f32 %v1788, %v1793
    %v1795 = vadd.f32 %v1792, %v1794
    %s1796 = scalar_lea.vmem [#allocation10], 56
    %1797 = vst [vmem:[%s1796] sm:$0xff] %v1795
    %1798 = vst [vmem:[#allocation3] sm:$0xff] %v1795
    // Predicated region
    $region38: #{tpu_custom_call.1} parent=1 // pred_check
      _
    $region39: #{tpu_custom_call.1} parent=1 // pred_check_branch
      %1800 = sbr.rel (0) target = $region41
    $region40: #{tpu_custom_call.1} parent=1 // pred_region
      %s1802 = ssub.s32 1024, 1024
      %1803 = vsyncadd [#allocation6], %s1802
      %s1804 = sshll.u32 [#allocation10], 4
      %s1805 = int_to_ptr.vmem [resolvable:$true] %s1804
      %1810 = dma.vmem_to_hbm [thread:$0]  %s1805, 1024, %s5, [#allocation6], 128, 128, 8
    $region41: #{tpu_custom_call.1} parent=1 // pred_fallthru
      _
    // Predicated region
    $region42: #{tpu_custom_call.1} parent=1 // pred_check
      _
    $region43: #{tpu_custom_call.1} parent=1 // pred_check_branch
      %1812 = sbr.rel (0) target = $region45
    $region44: #{tpu_custom_call.1} parent=1 // pred_region
      %1813 = dma.done [#allocation6], 1024
    $region45: #{tpu_custom_call.1} parent=1 // pred_fallthru
      _
    %1814 = vsyncpa [#allocation5], 1
    %1815 = vsyncpa [#allocation8], 1
    %1816 = vsyncpa [#allocation6], 1

</llo_original>
